<compile_context>
chip_gen: v7x
topology: tpu7x:2x2x1
jax: 0.10.0
libtpu: 0.0.40
codegen_flags: <defaults>
</compile_context>

<pallas_src>
import functools
import math

import jax
import jax.numpy as jnp
from jax.experimental import pallas as pl
from jax.experimental.pallas import tpu as pltpu

LANE = 128


# ----------------------------------------------------------------------------
# Helpers
# ----------------------------------------------------------------------------
def _round_up(x, m):
    return (x + m - 1) // m * m


def _pad_cols(a, n_pad):
    n = a.shape[1]
    return a if n_pad == n else jnp.pad(a, ((0, 0), (0, n_pad - n)))


def _pad_rows(a, m_pad):
    m = a.shape[0]
    return a if m_pad == m else jnp.pad(a, ((0, m_pad - m), (0, 0)))


def _sigmoid(x):
    # Single-transcendental sigmoid: one EUP tanh instead of exp + divide.
    return 0.5 * (jnp.tanh(0.5 * x) + 1.0)


@functools.lru_cache(maxsize=None)
def _vmem_capacity_bytes():
    """Physical VMEM per TensorCore (generation-aware), with a safe fallback."""
    try:
        cap = int(pltpu.get_tpu_info().vmem_capacity_bytes)
        if cap > 0:
            return cap
    except Exception:
        pass
    return 64 << 20  # conservative default: v7x per-TensorCore VMEM


# ----------------------------------------------------------------------------
# Parameters (synthetic, PyTorch-like init) + one-time packing for the kernel
# ----------------------------------------------------------------------------
def make_fp_growing_params(key, hidden_input_dim, final_target_dim,
                           num_splits, reduce_factor, dtype=jnp.float32):
    layer_dims = [
        int(math.ceil(final_target_dim / reduce_factor ** k))
        for k in range(num_splits + 1)
    ][::-1]

    def init_linear(k, fan_in, fan_out):
        kw, kb = jax.random.split(k)
        bound = 1.0 / math.sqrt(fan_in)  # mimic PyTorch default init scale
        w = jax.random.uniform(kw, (fan_in, fan_out), jnp.float32, -bound, bound)
        b = jax.random.uniform(kb, (1, fan_out), jnp.float32, -bound, bound)
        return w.astype(dtype), b.astype(dtype)

    keys = jax.random.split(key, 1 + 2 * max(num_splits, 1))
    params = {"initial": init_linear(keys[0], hidden_input_dim, layer_dims[0]),
              "predict": [], "gate": []}
    for i in range(num_splits):
        in_dim, out_dim = layer_dims[i], layer_dims[i + 1]
        params["predict"].append(init_linear(keys[1 + 2 * i], in_dim, out_dim))
        params["gate"].append(init_linear(keys[2 + 2 * i], hidden_input_dim, out_dim))
    return params, layer_dims


def prepare_fp_growing_params(params):
    """One-time packing for the kernels (NOT done per forward call):
      * every layer / gate width is zero-padded to a multiple of 128 so
        output stores are lane-dense and in-kernel gate slices are aligned,
      * all gate weights are concatenated into one wide matrix so every gate
        is computed with a single MXU pass,
      * predict weights get zero ROW padding so padded `cur` lanes never
        contaminate the next prediction."""
    w0, b0 = params["initial"]
    n = len(params["predict"])
    dims = [w0.shape[1]] + [wp.shape[1] for wp, _ in params["predict"]]
    dims_pad = [_round_up(d, LANE) for d in dims]

    prep = {
        "n": n,
        "hidden_dim": w0.shape[0],
        "dims": dims,
        "dims_pad": dims_pad,
        "w0": _pad_cols(w0, dims_pad[0]),
        "b0": _pad_cols(b0, dims_pad[0]),
        "wp": [],
        "bp": [],
        "wg_cat": None,
        "bg_cat": None,
        "gate_offsets": [],
        "gate_total": 0,
    }
    if n > 0:
        wg_parts, bg_parts, offs = [], [], []
        off = 0
        for i, (wg, bg) in enumerate(params["gate"]):
            dp = dims_pad[i + 1]
            wg_parts.append(_pad_cols(wg, dp))
            bg_parts.append(_pad_cols(bg, dp))
            offs.append(off)
            off += dp
        prep["wg_cat"] = jnp.concatenate(wg_parts, axis=1)
        prep["bg_cat"] = jnp.concatenate(bg_parts, axis=1)
        prep["gate_offsets"] = offs
        prep["gate_total"] = off
        for i, (wp, bp) in enumerate(params["predict"]):
            prep["wp"].append(_pad_rows(_pad_cols(wp, dims_pad[i + 1]), dims_pad[i]))
            prep["bp"].append(_pad_cols(bp, dims_pad[i + 1]))
    return prep


# ----------------------------------------------------------------------------
# Fused whole-forward kernel (all weights resident in VMEM, one pallas_call)
# ----------------------------------------------------------------------------
def _make_fused_kernel(n, dims_pad, gate_offsets):
    def kernel(*refs):
        # Inputs : hidden, w0, b0, [wg_cat, bg_cat], (wp_i, bp_i) * n
        # Outputs: out_0 .. out_n
        # Scratch: gates VMEM buffer (only when n > 0)
        idx = 0
        h_ref = refs[idx]; idx += 1
        w0_ref, b0_ref = refs[idx], refs[idx + 1]; idx += 2
        if n > 0:
            wg_ref, bg_ref = refs[idx], refs[idx + 1]; idx += 2
        wp_refs, bp_refs = [], []
        for _ in range(n):
            wp_refs.append(refs[idx]); bp_refs.append(refs[idx + 1]); idx += 2
        out_refs = refs[idx: idx + n + 1]
        gates_ref = refs[-1] if n > 0 else None

        h = h_ref[...]

        # All gate branches share `hidden`: one wide MXU pass for every gate,
        # staged in VMEM scratch so the serial pred chain reads 128-aligned
        # slices instead of keeping the whole gate tensor live in vregs.
        if n > 0:
            gates_ref[...] = _sigmoid(
                jnp.dot(h, wg_ref[...], preferred_element_type=jnp.float32)
                + bg_ref[...])

        cur = _sigmoid(
            jnp.dot(h, w0_ref[...], preferred_element_type=jnp.float32)
            + b0_ref[...])
        out_refs[0][...] = cur.astype(out_refs[0].dtype)

        for i in range(n):
            off, d = gate_offsets[i], dims_pad[i + 1]
            pred = _sigmoid(
                jnp.dot(cur, wp_refs[i][...], preferred_element_type=jnp.float32)
                + bp_refs[i][...])
            cur = gates_ref[:, off:off + d] * pred     # 128-aligned static slice
            out_refs[i + 1][...] = cur.astype(out_refs[i + 1].dtype)

    return kernel


def _fused_vmem_bytes(prep, hidden, tb):
    """VMEM footprint estimate (bytes), counting Pallas's 2x buffering of every
    pipelined operand (weights, input tile, output tiles) plus scratch."""
    H = prep["hidden_dim"]
    n = prep["n"]
    dims_pad = prep["dims_pad"]
    w_item = prep["w0"].dtype.itemsize
    x_item = hidden.dtype.itemsize

    wsz = prep["w0"].size + prep["b0"].size
    if n > 0:
        wsz += prep["wg_cat"].size + prep["bg_cat"].size
        wsz += sum(w.size + b.size for w, b in zip(prep["wp"], prep["bp"]))

    weight_bytes = 2 * wsz * w_item                       # double-buffered
    in_bytes = 2 * tb * H * x_item
    out_bytes = 2 * tb * sum(dims_pad) * x_item
    scratch_bytes = tb * prep["gate_total"] * 4
    act_bytes = 4 * tb * (max(dims_pad) if dims_pad else 0) * 4  # live f32 temps
    return int(weight_bytes + in_bytes + out_bytes + scratch_bytes
               + act_bytes + (1 << 20))


def _select_batch_tile(B, est_fn, budget):
    """>=2 batch tiles when B>8 (lets 'parallel' shard over v7x's 2 TCs),
    capped at 512 rows, shrunk until the footprint fits the budget."""
    if B <= 8:
        return B
    tb = min(512, _round_up(pl.cdiv(B, 2), 8))
    tb = min(tb, _round_up(B, 8))
    while tb > 8 and est_fn(tb) > budget:
        tb = _round_up(pl.cdiv(tb, 2), 8)
    return tb


def _fused_forward(prep, hidden, *, batch_tile, vmem_limit=None):
    B, H = hidden.shape
    n = prep["n"]
    dims, dims_pad = prep["dims"], prep["dims_pad"]

    inputs = [hidden, prep["w0"], prep["b0"]]
    if n > 0:
        inputs += [prep["wg_cat"], prep["bg_cat"]]
        for wp, bp in zip(prep["wp"], prep["bp"]):
            inputs += [wp, bp]

    tb = batch_tile
    grid = (pl.cdiv(B, tb),)

    batch_map = lambda i: (i, 0)
    # Constant block index: weights are DMA'd once and stay resident in VMEM
    # across all batch tiles (no re-DMA per grid step).
    const_map = lambda i: (0, 0)

    in_specs = [pl.BlockSpec((tb, H), batch_map)]
    in_specs += [pl.BlockSpec(a.shape, const_map) for a in inputs[1:]]

    out_shape = tuple(jax.ShapeDtypeStruct((B, d), hidden.dtype) for d in dims_pad)
    out_specs = tuple(pl.BlockSpec((tb, d), batch_map) for d in dims_pad)

    scratch_shapes = []
    if n > 0:
        scratch_shapes.append(pltpu.VMEM((tb, prep["gate_total"]), jnp.float32))

    cp = {"dimension_semantics": ("parallel",)}
    if vmem_limit is not None:
        cp["vmem_limit_bytes"] = int(vmem_limit)

    outs = pl.pallas_call(
        _make_fused_kernel(n, dims_pad, prep["gate_offsets"]),
        out_shape=out_shape,
        grid=grid,
        in_specs=in_specs,
        out_specs=out_specs,
        scratch_shapes=scratch_shapes,
        compiler_params=pltpu.CompilerParams(**cp),
    )(*inputs)
    return [o if o.shape[1] == d else o[:, :d] for o, d in zip(outs, dims)]


# ----------------------------------------------------------------------------
# Tiled fallback (weights too large for resident-VMEM fused path)
# ----------------------------------------------------------------------------
def _linear_sigmoid_kernel(x_ref, w_ref, b_ref, o_ref):
    acc = jnp.dot(x_ref[...], w_ref[...], preferred_element_type=jnp.float32)
    o_ref[...] = _sigmoid(acc + b_ref[...]).astype(o_ref.dtype)


def _gated_pred_kernel(g_ref, x_ref, w_ref, b_ref, o_ref):
    pred = _sigmoid(
        jnp.dot(x_ref[...], w_ref[...], preferred_element_type=jnp.float32)
        + b_ref[...])
    o_ref[...] = (g_ref[...] * pred).astype(o_ref.dtype)


def _tiled_linear_sigmoid(x, w, b, *, batch_tile=256, col_tile=512):
    B, K = x.shape
    Np = w.shape[1]                       # already a multiple of 128 (prep)
    tb = B if B <= batch_tile else batch_tile
    tn = Np if Np <= col_tile else col_tile
    grid = (pl.cdiv(B, tb), pl.cdiv(Np, tn))
    return pl.pallas_call(
        _linear_sigmoid_kernel,
        out_shape=jax.ShapeDtypeStruct((B, Np), x.dtype),
        grid=grid,
        in_specs=[
            pl.BlockSpec((tb, K), lambda i, j: (i, 0)),
            pl.BlockSpec((K, tn), lambda i, j: (0, j)),
            pl.BlockSpec((1, tn), lambda i, j: (0, j)),
        ],
        out_specs=pl.BlockSpec((tb, tn), lambda i, j: (i, j)),
        compiler_params=pltpu.CompilerParams(
            dimension_semantics=("parallel", "parallel")),
    )(x, w, b)


def _tiled_gated_pred(gate, x, w, b, *, batch_tile=256, col_tile=512):
    B, K = x.shape
    Np = w.shape[1]
    tb = B if B <= batch_tile else batch_tile
    tn = Np if Np <= col_tile else col_tile
    grid = (pl.cdiv(B, tb), pl.cdiv(Np, tn))
    return pl.pallas_call(
        _gated_pred_kernel,
        out_shape=jax.ShapeDtypeStruct((B, Np), x.dtype),
        grid=grid,
        in_specs=[
            pl.BlockSpec((tb, tn), lambda i, j: (i, j)),
            pl.BlockSpec((tb, K), lambda i, j: (i, 0)),
            pl.BlockSpec((K, tn), lambda i, j: (0, j)),
            pl.BlockSpec((1, tn), lambda i, j: (0, j)),
        ],
        out_specs=pl.BlockSpec((tb, tn), lambda i, j: (i, j)),
        compiler_params=pltpu.CompilerParams(
            dimension_semantics=("parallel", "parallel")),
    )(gate, x, w, b)


def _tiled_forward(prep, hidden):
    n = prep["n"]
    dims, dims_pad = prep["dims"], prep["dims_pad"]
    cur = _tiled_linear_sigmoid(hidden, prep["w0"], prep["b0"])
    outs = [cur]
    if n > 0:
        # All gates in one wide (tiled) matmul pass over the shared `hidden`.
        gates = _tiled_linear_sigmoid(hidden, prep["wg_cat"], prep["bg_cat"])
        for i in range(n):
            off, dp = prep["gate_offsets"][i], dims_pad[i + 1]
            cur = _tiled_gated_pred(gates[:, off:off + dp], cur,
                                    prep["wp"][i], prep["bp"][i])
            outs.append(cur)
    return [o if o.shape[1] == d else o[:, :d] for o, d in zip(outs, dims)]


# ----------------------------------------------------------------------------
# Forward dispatch
# ----------------------------------------------------------------------------
def fp_growing_forward(params, hidden, *, prep=None, force_tiled=False):
    if prep is None:
        prep = prepare_fp_growing_params(params)
    if force_tiled:
        return _tiled_forward(prep, hidden)

    cap = _vmem_capacity_bytes()
    budget = int(0.70 * cap)              # headroom for compiler scratch/spill
    B = hidden.shape[0]
    est_fn = lambda tb: _fused_vmem_bytes(prep, hidden, tb)
    tb = _select_batch_tile(B, est_fn, budget)
    est = est_fn(tb)
    if est > budget:
        return _tiled_forward(prep, hidden)

    vmem_limit = None
    if est > (12 << 20):                  # v5e default scoped VMEM is 16 MiB
        vmem_limit = min(_round_up(int(1.25 * est), 1 << 20), int(0.9 * cap))
    return _fused_forward(prep, hidden, batch_tile=tb, vmem_limit=vmem_limit)


# Pure-JAX reference for the correctness check.
def fp_growing_reference(params, hidden):
    w0, b0 = params["initial"]
    cur = jax.nn.sigmoid(hidden @ w0 + b0)
    outs = [cur]
    for (wp, bp), (wg, bg) in zip(params["predict"], params["gate"]):
        gate = jax.nn.sigmoid(hidden @ wg + bg)
        pred = jax.nn.sigmoid(cur @ wp + bp)
        cur = gate * pred
        outs.append(cur)
    return outs


if __name__ == "__main__":
    key = jax.random.PRNGKey(0)

    def _check(outs, refs, dims, batch, tag):
        for o, r, d in zip(outs, refs, dims):
            assert o.shape == (batch, d), (tag, o.shape, d)
            assert jnp.allclose(o, r, atol=1e-5, rtol=1e-5), f"{tag} mismatch at dim {d}"

    # --- Config A: lane-aligned dims (hidden=128 -> [128, 256, 512]) ---------
    k_params, k_x, key = jax.random.split(key, 3)
    params_a, dims_a = make_fp_growing_params(k_params, 128, 512, 2, 2)
    hidden_a = jax.random.normal(k_x, (8, 128), jnp.float32)
    prep_a = prepare_fp_growing_params(params_a)
    refs_a = fp_growing_reference(params_a, hidden_a)

    outs = [jax.block_until_ready(o)
            for o in fp_growing_forward(params_a, hidden_a, prep=prep_a)]
    _check(outs, refs_a, dims_a, 8, "fused/aligned")

    outs_t = [jax.block_until_ready(o)
              for o in fp_growing_forward(params_a, hidden_a, prep=prep_a,
                                          force_tiled=True)]
    _check(outs_t, refs_a, dims_a, 8, "tiled/aligned")

    # --- Config B: non-128-multiple dims ([75, 150, 300]) exercises padding --
    k_params, k_x, key = jax.random.split(key, 3)
    params_b, dims_b = make_fp_growing_params(k_params, 128, 300, 2, 2)
    hidden_b = jax.random.normal(k_x, (8, 128), jnp.float32)
    prep_b = prepare_fp_growing_params(params_b)
    refs_b = fp_growing_reference(params_b, hidden_b)

    outs_b = [jax.block_until_ready(o)
              for o in fp_growing_forward(params_b, hidden_b, prep=prep_b)]
    _check(outs_b, refs_b, dims_b, 8, "fused/padded")

    print("KERNEL_OK")
</pallas_src>

<mosaic_0001>
module attributes {stable_mosaic.version = 11 : i64} {
  func.func @kernel(%arg0: i32, %arg1: memref<8x128xf32, #tpu.memory_space<vmem>>, %arg2: memref<128x128xf32, #tpu.memory_space<vmem>>, %arg3: memref<1x128xf32, #tpu.memory_space<vmem>>, %arg4: memref<128x768xf32, #tpu.memory_space<vmem>>, %arg5: memref<1x768xf32, #tpu.memory_space<vmem>>, %arg6: memref<128x256xf32, #tpu.memory_space<vmem>>, %arg7: memref<1x256xf32, #tpu.memory_space<vmem>>, %arg8: memref<256x512xf32, #tpu.memory_space<vmem>>, %arg9: memref<1x512xf32, #tpu.memory_space<vmem>>, %arg10: memref<8x128xf32, #tpu.memory_space<vmem>>, %arg11: memref<8x256xf32, #tpu.memory_space<vmem>>, %arg12: memref<8x512xf32, #tpu.memory_space<vmem>>, %arg13: memref<8x768xf32, #tpu.memory_space<vmem>>) attributes {dimension_semantics = [#tpu.dimension_semantics<parallel>], iteration_bounds = array<i64: 1>, scalar_prefetch = 0 : i64, scratch_operands = 1 : i64, tpu.core_type = #tpu.core_type<tc>, window_params = [{transform_indices = @transform_0, window_bounds = array<i64: 8, 128>}, {pipeline_mode = #tpu.pipeline_mode<synchronous>, transform_indices = @transform_1, window_bounds = array<i64: 128, 128>}, {pipeline_mode = #tpu.pipeline_mode<synchronous>, transform_indices = @transform_2, window_bounds = array<i64: 1, 128>}, {pipeline_mode = #tpu.pipeline_mode<synchronous>, transform_indices = @transform_3, window_bounds = array<i64: 128, 768>}, {pipeline_mode = #tpu.pipeline_mode<synchronous>, transform_indices = @transform_4, window_bounds = array<i64: 1, 768>}, {pipeline_mode = #tpu.pipeline_mode<synchronous>, transform_indices = @transform_5, window_bounds = array<i64: 128, 256>}, {pipeline_mode = #tpu.pipeline_mode<synchronous>, transform_indices = @transform_6, window_bounds = array<i64: 1, 256>}, {pipeline_mode = #tpu.pipeline_mode<synchronous>, transform_indices = @transform_7, window_bounds = array<i64: 256, 512>}, {pipeline_mode = #tpu.pipeline_mode<synchronous>, transform_indices = @transform_8, window_bounds = array<i64: 1, 512>}, {transform_indices = @transform_9, window_bounds = array<i64: 8, 128>}, {transform_indices = @transform_10, window_bounds = array<i64: 8, 256>}, {transform_indices = @transform_11, window_bounds = array<i64: 8, 512>}]} {
    %c0 = arith.constant 0 : index
    %c0_0 = arith.constant 0 : index
    %0 = vector.load %arg1[%c0, %c0_0] : memref<8x128xf32, #tpu.memory_space<vmem>>, vector<8x128xf32>
    %c0_1 = arith.constant 0 : index
    %c0_2 = arith.constant 0 : index
    %1 = vector.load %arg4[%c0_1, %c0_2] : memref<128x768xf32, #tpu.memory_space<vmem>>, vector<128x768xf32>
    %cst = arith.constant dense<0.000000e+00> : vector<8x768xf32>
    %2 = tpu.matmul %0, %1, %cst {dimension_numbers = #tpu.dot_dimension_numbers<[1], [0], [0], [1], [0, 0, 1, 1], [], []>} : vector<8x128xf32>, vector<128x768xf32>, vector<8x768xf32> -> vector<8x768xf32>
    %c0_3 = arith.constant 0 : index
    %c0_4 = arith.constant 0 : index
    %3 = vector.load %arg5[%c0_3, %c0_4] : memref<1x768xf32, #tpu.memory_space<vmem>>, vector<1x768xf32>
    %4 = vector.broadcast %3 : vector<1x768xf32> to vector<8x768xf32>
    %5 = arith.addf %2, %4 : vector<8x768xf32>
    %cst_5 = arith.constant 5.000000e-01 : f32
    %6 = vector.broadcast %cst_5 : f32 to vector<8x768xf32>
    %7 = arith.mulf %6, %5 : vector<8x768xf32>
    %8 = math.tanh %7 : vector<8x768xf32>
    %cst_6 = arith.constant 1.000000e+00 : f32
    %9 = vector.broadcast %cst_6 : f32 to vector<8x768xf32>
    %10 = arith.addf %8, %9 : vector<8x768xf32>
    %cst_7 = arith.constant 5.000000e-01 : f32
    %11 = vector.broadcast %cst_7 : f32 to vector<8x768xf32>
    %12 = arith.mulf %11, %10 : vector<8x768xf32>
    %c0_8 = arith.constant 0 : index
    %c0_9 = arith.constant 0 : index
    %13 = vector.load %arg13[%c0_8, %c0_9] : memref<8x768xf32, #tpu.memory_space<vmem>>, vector<8x768xf32>
    tpu.vector_store %arg13[%c0_8, %c0_9], %12 {strides = array<i32>} : memref<8x768xf32, #tpu.memory_space<vmem>>, vector<8x768xf32>,
    %c0_10 = arith.constant 0 : index
    %c0_11 = arith.constant 0 : index
    %14 = vector.load %arg2[%c0_10, %c0_11] : memref<128x128xf32, #tpu.memory_space<vmem>>, vector<128x128xf32>
    %cst_12 = arith.constant dense<0.000000e+00> : vector<8x128xf32>
    %15 = tpu.matmul %0, %14, %cst_12 {dimension_numbers = #tpu.dot_dimension_numbers<[1], [0], [0], [1], [0, 0, 1, 1], [], []>} : vector<8x128xf32>, vector<128x128xf32>, vector<8x128xf32> -> vector<8x128xf32>
    %c0_13 = arith.constant 0 : index
    %c0_14 = arith.constant 0 : index
    %16 = vector.load %arg3[%c0_13, %c0_14] : memref<1x128xf32, #tpu.memory_space<vmem>>, vector<1x128xf32>
    %17 = vector.broadcast %16 : vector<1x128xf32> to vector<8x128xf32>
    %18 = arith.addf %15, %17 : vector<8x128xf32>
    %cst_15 = arith.constant 5.000000e-01 : f32
    %19 = vector.broadcast %cst_15 : f32 to vector<8x128xf32>
    %20 = arith.mulf %19, %18 : vector<8x128xf32>
    %21 = math.tanh %20 : vector<8x128xf32>
    %cst_16 = arith.constant 1.000000e+00 : f32
    %22 = vector.broadcast %cst_16 : f32 to vector<8x128xf32>
    %23 = arith.addf %21, %22 : vector<8x128xf32>
    %cst_17 = arith.constant 5.000000e-01 : f32
    %24 = vector.broadcast %cst_17 : f32 to vector<8x128xf32>
    %25 = arith.mulf %24, %23 : vector<8x128xf32>
    %c0_18 = arith.constant 0 : index
    %c0_19 = arith.constant 0 : index
    %26 = vector.load %arg10[%c0_18, %c0_19] : memref<8x128xf32, #tpu.memory_space<vmem>>, vector<8x128xf32>
    tpu.vector_store %arg10[%c0_18, %c0_19], %25 {strides = array<i32>} : memref<8x128xf32, #tpu.memory_space<vmem>>, vector<8x128xf32>,
    %c0_20 = arith.constant 0 : index
    %c0_21 = arith.constant 0 : index
    %27 = vector.load %arg6[%c0_20, %c0_21] : memref<128x256xf32, #tpu.memory_space<vmem>>, vector<128x256xf32>
    %cst_22 = arith.constant dense<0.000000e+00> : vector<8x256xf32>
    %28 = tpu.matmul %25, %27, %cst_22 {dimension_numbers = #tpu.dot_dimension_numbers<[1], [0], [0], [1], [0, 0, 1, 1], [], []>} : vector<8x128xf32>, vector<128x256xf32>, vector<8x256xf32> -> vector<8x256xf32>
    %c0_23 = arith.constant 0 : index
    %c0_24 = arith.constant 0 : index
    %29 = vector.load %arg7[%c0_23, %c0_24] : memref<1x256xf32, #tpu.memory_space<vmem>>, vector<1x256xf32>
    %30 = vector.broadcast %29 : vector<1x256xf32> to vector<8x256xf32>
    %31 = arith.addf %28, %30 : vector<8x256xf32>
    %cst_25 = arith.constant 5.000000e-01 : f32
    %32 = vector.broadcast %cst_25 : f32 to vector<8x256xf32>
    %33 = arith.mulf %32, %31 : vector<8x256xf32>
    %34 = math.tanh %33 : vector<8x256xf32>
    %cst_26 = arith.constant 1.000000e+00 : f32
    %35 = vector.broadcast %cst_26 : f32 to vector<8x256xf32>
    %36 = arith.addf %34, %35 : vector<8x256xf32>
    %cst_27 = arith.constant 5.000000e-01 : f32
    %37 = vector.broadcast %cst_27 : f32 to vector<8x256xf32>
    %38 = arith.mulf %37, %36 : vector<8x256xf32>
    %c0_28 = arith.constant 0 : index
    %c0_29 = arith.constant 0 : index
    %39 = vector.load %arg13[%c0_28, %c0_29] : memref<8x768xf32, #tpu.memory_space<vmem>>, vector<8x256xf32>
    %40 = arith.mulf %39, %38 : vector<8x256xf32>
    %c0_30 = arith.constant 0 : index
    %c0_31 = arith.constant 0 : index
    %41 = vector.load %arg11[%c0_30, %c0_31] : memref<8x256xf32, #tpu.memory_space<vmem>>, vector<8x256xf32>
    tpu.vector_store %arg11[%c0_30, %c0_31], %40 {strides = array<i32>} : memref<8x256xf32, #tpu.memory_space<vmem>>, vector<8x256xf32>,
    %c0_32 = arith.constant 0 : index
    %c0_33 = arith.constant 0 : index
    %42 = vector.load %arg8[%c0_32, %c0_33] : memref<256x512xf32, #tpu.memory_space<vmem>>, vector<256x512xf32>
    %cst_34 = arith.constant dense<0.000000e+00> : vector<8x512xf32>
    %43 = tpu.matmul %40, %42, %cst_34 {dimension_numbers = #tpu.dot_dimension_numbers<[1], [0], [0], [1], [0, 0, 1, 1], [], []>} : vector<8x256xf32>, vector<256x512xf32>, vector<8x512xf32> -> vector<8x512xf32>
    %c0_35 = arith.constant 0 : index
    %c0_36 = arith.constant 0 : index
    %44 = vector.load %arg9[%c0_35, %c0_36] : memref<1x512xf32, #tpu.memory_space<vmem>>, vector<1x512xf32>
    %45 = vector.broadcast %44 : vector<1x512xf32> to vector<8x512xf32>
    %46 = arith.addf %43, %45 : vector<8x512xf32>
    %cst_37 = arith.constant 5.000000e-01 : f32
    %47 = vector.broadcast %cst_37 : f32 to vector<8x512xf32>
    %48 = arith.mulf %47, %46 : vector<8x512xf32>
    %49 = math.tanh %48 : vector<8x512xf32>
    %cst_38 = arith.constant 1.000000e+00 : f32
    %50 = vector.broadcast %cst_38 : f32 to vector<8x512xf32>
    %51 = arith.addf %49, %50 : vector<8x512xf32>
    %cst_39 = arith.constant 5.000000e-01 : f32
    %52 = vector.broadcast %cst_39 : f32 to vector<8x512xf32>
    %53 = arith.mulf %52, %51 : vector<8x512xf32>
    %c0_40 = arith.constant 0 : index
    %c256 = arith.constant 256 : index
    %54 = vector.load %arg13[%c0_40, %c256] : memref<8x768xf32, #tpu.memory_space<vmem>>, vector<8x512xf32>
    %55 = arith.mulf %54, %53 : vector<8x512xf32>
    %c0_41 = arith.constant 0 : index
    %c0_42 = arith.constant 0 : index
    %56 = vector.load %arg12[%c0_41, %c0_42] : memref<8x512xf32, #tpu.memory_space<vmem>>, vector<8x512xf32>
    tpu.vector_store %arg12[%c0_41, %c0_42], %55 {strides = array<i32>} : memref<8x512xf32, #tpu.memory_space<vmem>>, vector<8x512xf32>,
    return
  }
  func.func @transform_0(%arg0: i32) -> (i32, i32) {
    %c0_i32 = arith.constant 0 : i32
    %c0_i32_0 = arith.constant 0 : i32
    return %arg0, %c0_i32 : i32, i32
  }
  func.func @transform_1(%arg0: i32) -> (i32, i32) {
    %c0_i32 = arith.constant 0 : i32
    %c0_i32_0 = arith.constant 0 : i32
    %c0_i32_1 = arith.constant 0 : i32
    return %c0_i32, %c0_i32_0 : i32, i32
  }
  func.func @transform_2(%arg0: i32) -> (i32, i32) {
    %c0_i32 = arith.constant 0 : i32
    %c0_i32_0 = arith.constant 0 : i32
    %c0_i32_1 = arith.constant 0 : i32
    return %c0_i32, %c0_i32_0 : i32, i32
  }
  func.func @transform_3(%arg0: i32) -> (i32, i32) {
    %c0_i32 = arith.constant 0 : i32
    %c0_i32_0 = arith.constant 0 : i32
    %c0_i32_1 = arith.constant 0 : i32
    return %c0_i32, %c0_i32_0 : i32, i32
  }
  func.func @transform_4(%arg0: i32) -> (i32, i32) {
    %c0_i32 = arith.constant 0 : i32
    %c0_i32_0 = arith.constant 0 : i32
    %c0_i32_1 = arith.constant 0 : i32
    return %c0_i32, %c0_i32_0 : i32, i32
  }
  func.func @transform_5(%arg0: i32) -> (i32, i32) {
    %c0_i32 = arith.constant 0 : i32
    %c0_i32_0 = arith.constant 0 : i32
    %c0_i32_1 = arith.constant 0 : i32
    return %c0_i32, %c0_i32_0 : i32, i32
  }
  func.func @transform_6(%arg0: i32) -> (i32, i32) {
    %c0_i32 = arith.constant 0 : i32
    %c0_i32_0 = arith.constant 0 : i32
    %c0_i32_1 = arith.constant 0 : i32
    return %c0_i32, %c0_i32_0 : i32, i32
  }
  func.func @transform_7(%arg0: i32) -> (i32, i32) {
    %c0_i32 = arith.constant 0 : i32
    %c0_i32_0 = arith.constant 0 : i32
    %c0_i32_1 = arith.constant 0 : i32
    return %c0_i32, %c0_i32_0 : i32, i32
  }
  func.func @transform_8(%arg0: i32) -> (i32, i32) {
    %c0_i32 = arith.constant 0 : i32
    %c0_i32_0 = arith.constant 0 : i32
    %c0_i32_1 = arith.constant 0 : i32
    return %c0_i32, %c0_i32_0 : i32, i32
  }
  func.func @transform_9(%arg0: i32) -> (i32, i32) {
    %c0_i32 = arith.constant 0 : i32
    %c0_i32_0 = arith.constant 0 : i32
    return %arg0, %c0_i32 : i32, i32
  }
  func.func @transform_10(%arg0: i32) -> (i32, i32) {
    %c0_i32 = arith.constant 0 : i32
    %c0_i32_0 = arith.constant 0 : i32
    return %arg0, %c0_i32 : i32, i32
  }
  func.func @transform_11(%arg0: i32) -> (i32, i32) {
    %c0_i32 = arith.constant 0 : i32
    %c0_i32_0 = arith.constant 0 : i32
    return %arg0, %c0_i32 : i32, i32
  }
}

</mosaic_0001>

<llo_original>
// kernel: tpu_custom_call.1
$region0: #{tpu_custom_call.1}
  #allocation0 [shape = 'u32[]', space=smem, size = 0x4, offset = 0x4, fixed_abs, tag = 'smem constant byte address 0x4 - core index']
  #allocation1 [shape = 'u32[144,128]{1,0:T(1,128)}', space=vmem, size = 0x12000, scoped, tag = 'internal scratch']
  #allocation2 [shape = 'f32[8,768]{1,0:T(8,128)}', space=vmem, size = 0x6000, scoped, tag = 'scratch operand']
  %s0 = inlined_call_operand.hbm [shape: f32[8,128], index: 0, kind: input, shape index: {}]
  %s1 = inlined_call_operand.hbm [shape: f32[128,128], index: 1, kind: input, shape index: {}]
  %s2 = inlined_call_operand.vmem [shape: f32[1,128], index: 2, kind: input, shape index: {}]
  %s3 = inlined_call_operand.hbm [shape: f32[128,768], index: 3, kind: input, shape index: {}]
  %s4 = inlined_call_operand.vmem [shape: f32[1,768], index: 4, kind: input, shape index: {}]
  %s5 = inlined_call_operand.hbm [shape: f32[128,256], index: 5, kind: input, shape index: {}]
  %s6 = inlined_call_operand.vmem [shape: f32[1,256], index: 6, kind: input, shape index: {}]
  %s7 = inlined_call_operand.hbm [shape: f32[256,512], index: 7, kind: input, shape index: {}]
  %s8 = inlined_call_operand.vmem [shape: f32[1,512], index: 8, kind: input, shape index: {}]
  %s9 = inlined_call_operand.hbm [shape: f32[8,128], index: 9, kind: output, shape index: {0}]
  %s10 = inlined_call_operand.hbm [shape: f32[8,256], index: 10, kind: output, shape index: {1}]
  %s11 = inlined_call_operand.hbm [shape: f32[8,512], index: 11, kind: output, shape index: {2}]
  %12 = xla_tuple %s9, %s10, %s11
  %s13 = sld [smem:[#allocation0]]
  $region82: #{tpu_custom_call.1} parent=0
    _
  %s15 = ssub.s32 1, %s13
  %s16 = scalar_select 0, %s15, %s13
  $region1: #{tpu_custom_call.1} parent=0
    #allocation3 [shape = 'u8[4096]{0}', space=vmem, size = 0x1000, scoped, tag = 'input window, operand 0, single buffered']
    #allocation4 [shape = 's32[1]{0}', space=sflag, size = 0x4, scoped, tag = 'scoped memory for tpu_custom_call.1']
    #allocation5 [shape = 's32[1]{0}', space=sflag, size = 0x4, scoped, tag = 'scoped memory for tpu_custom_call.1']
    #allocation6 [shape = 'u8[65536]{0}', space=vmem, size = 0x10000, scoped, tag = 'input window, operand 1, single buffered']
    #allocation7 [shape = 's32[1]{0}', space=sflag, size = 0x4, scoped, tag = 'scoped memory for tpu_custom_call.1']
    #allocation8 [shape = 'u8[393216]{0}', space=vmem, size = 0x60000, scoped, tag = 'input window, operand 3, single buffered']
    #allocation9 [shape = 'u8[131072]{0}', space=vmem, size = 0x20000, scoped, tag = 'input window, operand 5, single buffered']
    #allocation10 [shape = 's32[1]{0}', space=sflag, size = 0x4, scoped, tag = 'scoped memory for tpu_custom_call.1']
    #allocation11 [shape = 'u8[524288]{0}', space=vmem, size = 0x80000, scoped, tag = 'input window, operand 7, single buffered']
    #allocation12 [shape = 'u8[4096]{0}', space=vmem, size = 0x1000, scoped, tag = 'output window, operand 0, single buffered']
    #allocation13 [shape = 'u8[8192]{0}', space=vmem, size = 0x2000, scoped, tag = 'output window, operand 1, single buffered']
    #allocation14 [shape = 's32[1]{0}', space=sflag, size = 0x4, scoped, tag = 'scoped memory for tpu_custom_call.1']
    #allocation15 [shape = 'u8[16384]{0}', space=vmem, size = 0x4000, scoped, tag = 'output window, operand 2, single buffered']
    %17 = vsyncpa [#allocation4], 0
    %18 = vsyncpa [#allocation7], 0
    %19 = vsyncpa [#allocation10], 0
    %20 = vsyncpa [#allocation5], 0
    %21 = vsyncpa [#allocation14], 0
    // Predicated region
    $region2: #{tpu_custom_call.1} parent=1 // pred_check
      _
    $region3: #{tpu_custom_call.1} parent=1 // pred_check_branch
      %23 = sbr.rel (0) target = $region5
    $region4: #{tpu_custom_call.1} parent=1 // pred_region
      %s25 = ssub.s32 128, 128
      %26 = vsyncadd [#allocation4], %s25
      %s28 = sshll.u32 [#allocation3], 4
      %s29 = int_to_ptr.vmem [resolvable:$true] %s28
      %31 = dma.hbm_to_vmem [thread:$0]  %s0, 128, %s29, [#allocation4]
    $region5: #{tpu_custom_call.1} parent=1 // pred_fallthru
      _
    // Predicated region
    $region6: #{tpu_custom_call.1} parent=1 // pred_check
      _
    $region7: #{tpu_custom_call.1} parent=1 // pred_check_branch
      %33 = sbr.rel (0) target = $region9
    $region8: #{tpu_custom_call.1} parent=1 // pred_region
      %s35 = ssub.s32 2048, 2048
      %36 = vsyncadd [#allocation7], %s35
      %s37 = sshll.u32 [#allocation6], 4
      %s38 = int_to_ptr.vmem [resolvable:$true] %s37
      %43 = dma.hbm_to_vmem [thread:$0]  %s1, 2048, %s38, [#allocation7], 128, 128, 8
    $region9: #{tpu_custom_call.1} parent=1 // pred_fallthru
      _
    // Predicated region
    $region10: #{tpu_custom_call.1} parent=1 // pred_check
      _
    $region11: #{tpu_custom_call.1} parent=1 // pred_check_branch
      %45 = sbr.rel (0) target = $region13
    $region12: #{tpu_custom_call.1} parent=1 // pred_region
      _
    $region13: #{tpu_custom_call.1} parent=1 // pred_fallthru
      _
    // Predicated region
    $region14: #{tpu_custom_call.1} parent=1 // pred_check
      _
    $region15: #{tpu_custom_call.1} parent=1 // pred_check_branch
      %47 = sbr.rel (0) target = $region17
    $region16: #{tpu_custom_call.1} parent=1 // pred_region
      %s49 = ssub.s32 12288, 12288
      %50 = vsyncadd [#allocation7], %s49
      %s51 = sshll.u32 [#allocation8], 4
      %s52 = int_to_ptr.vmem [resolvable:$true] %s51
      %57 = dma.hbm_to_vmem [thread:$0]  %s3, 12288, %s52, [#allocation7], 768, 768, 48
    $region17: #{tpu_custom_call.1} parent=1 // pred_fallthru
      _
    // Predicated region
    $region18: #{tpu_custom_call.1} parent=1 // pred_check
      _
    $region19: #{tpu_custom_call.1} parent=1 // pred_check_branch
      %59 = sbr.rel (0) target = $region21
    $region20: #{tpu_custom_call.1} parent=1 // pred_region
      _
    $region21: #{tpu_custom_call.1} parent=1 // pred_fallthru
      _
    // Predicated region
    $region22: #{tpu_custom_call.1} parent=1 // pred_check
      _
    $region23: #{tpu_custom_call.1} parent=1 // pred_check_branch
      %61 = sbr.rel (0) target = $region25
    $region24: #{tpu_custom_call.1} parent=1 // pred_region
      %s63 = ssub.s32 4096, 4096
      %64 = vsyncadd [#allocation10], %s63
      %s65 = sshll.u32 [#allocation9], 4
      %s66 = int_to_ptr.vmem [resolvable:$true] %s65
      %71 = dma.hbm_to_vmem [thread:$0]  %s5, 4096, %s66, [#allocation10], 256, 256, 16
    $region25: #{tpu_custom_call.1} parent=1 // pred_fallthru
      _
    // Predicated region
    $region26: #{tpu_custom_call.1} parent=1 // pred_check
      _
    $region27: #{tpu_custom_call.1} parent=1 // pred_check_branch
      %73 = sbr.rel (0) target = $region29
    $region28: #{tpu_custom_call.1} parent=1 // pred_region
      _
    $region29: #{tpu_custom_call.1} parent=1 // pred_fallthru
      _
    // Predicated region
    $region30: #{tpu_custom_call.1} parent=1 // pred_check
      _
    $region31: #{tpu_custom_call.1} parent=1 // pred_check_branch
      %75 = sbr.rel (0) target = $region33
    $region32: #{tpu_custom_call.1} parent=1 // pred_region
      %s77 = ssub.s32 16384, 16384
      %78 = vsyncadd [#allocation10], %s77
      %s79 = sshll.u32 [#allocation11], 4
      %s80 = int_to_ptr.vmem [resolvable:$true] %s79
      %85 = dma.hbm_to_vmem [thread:$0]  %s7, 16384, %s80, [#allocation10], 512, 512, 32
    $region33: #{tpu_custom_call.1} parent=1 // pred_fallthru
      _
    // Predicated region
    $region34: #{tpu_custom_call.1} parent=1 // pred_check
      _
    $region35: #{tpu_custom_call.1} parent=1 // pred_check_branch
      %87 = sbr.rel (0) target = $region37
    $region36: #{tpu_custom_call.1} parent=1 // pred_region
      _
    $region37: #{tpu_custom_call.1} parent=1 // pred_fallthru
      _
    // Predicated region
    $region38: #{tpu_custom_call.1} parent=1 // pred_check
      _
    $region39: #{tpu_custom_call.1} parent=1 // pred_check_branch
      %89 = sbr.rel (0) target = $region41
    $region40: #{tpu_custom_call.1} parent=1 // pred_region
      %90 = dma.done [#allocation4], 128
    $region41: #{tpu_custom_call.1} parent=1 // pred_fallthru
      _
    // Predicated region
    $region42: #{tpu_custom_call.1} parent=1 // pred_check
      _
    $region43: #{tpu_custom_call.1} parent=1 // pred_check_branch
      %92 = sbr.rel (0) target = $region45
    $region44: #{tpu_custom_call.1} parent=1 // pred_region
      %93 = dma.done [#allocation7], 2048
    $region45: #{tpu_custom_call.1} parent=1 // pred_fallthru
      _
    // Predicated region
    $region46: #{tpu_custom_call.1} parent=1 // pred_check
      _
    $region47: #{tpu_custom_call.1} parent=1 // pred_check_branch
      %95 = sbr.rel (0) target = $region49
    $region48: #{tpu_custom_call.1} parent=1 // pred_region
      %96 = dma.done [#allocation7], 12288
    $region49: #{tpu_custom_call.1} parent=1 // pred_fallthru
      _
    // Predicated region
    $region50: #{tpu_custom_call.1} parent=1 // pred_check
      _
    $region51: #{tpu_custom_call.1} parent=1 // pred_check_branch
      %98 = sbr.rel (0) target = $region53
    $region52: #{tpu_custom_call.1} parent=1 // pred_region
      %99 = dma.done [#allocation10], 4096
    $region53: #{tpu_custom_call.1} parent=1 // pred_fallthru
      _
    // Predicated region
    $region54: #{tpu_custom_call.1} parent=1 // pred_check
      _
    $region55: #{tpu_custom_call.1} parent=1 // pred_check_branch
      %101 = sbr.rel (0) target = $region57
    $region56: #{tpu_custom_call.1} parent=1 // pred_region
      %102 = dma.done [#allocation10], 16384
    $region57: #{tpu_custom_call.1} parent=1 // pred_fallthru
      _
    %v103 = vld [vmem:[#allocation3] sm:$0xff]
    %v104 = vld [vmem:[#allocation8] sm:$0xff]
    %v105 = vld [vmem:[#allocation8 + $0x8] sm:$0xff]
    %v106 = vld [vmem:[#allocation8 + $0x10] sm:$0xff]
    %v107 = vld [vmem:[#allocation8 + $0x18] sm:$0xff]
    %v108 = vld [vmem:[#allocation8 + $0x20] sm:$0xff]
    %v109 = vld [vmem:[#allocation8 + $0x28] sm:$0xff]
    %v110 = vld [vmem:[#allocation8 + $0x30] sm:$0xff]
    %v111 = vld [vmem:[#allocation8 + $0x38] sm:$0xff]
    %v112 = vld [vmem:[#allocation8 + $0x40] sm:$0xff]
    %v113 = vld [vmem:[#allocation8 + $0x48] sm:$0xff]
    %v114 = vld [vmem:[#allocation8 + $0x50] sm:$0xff]
    %v115 = vld [vmem:[#allocation8 + $0x58] sm:$0xff]
    %v116 = vld [vmem:[#allocation8 + $0x60] sm:$0xff]
    %v117 = vld [vmem:[#allocation8 + $0x68] sm:$0xff]
    %v118 = vld [vmem:[#allocation8 + $0x70] sm:$0xff]
    %v119 = vld [vmem:[#allocation8 + $0x78] sm:$0xff]
    %v120 = vld [vmem:[#allocation8 + $0x80] sm:$0xff]
    %v121 = vld [vmem:[#allocation8 + $0x88] sm:$0xff]
    %v122 = vld [vmem:[#allocation8 + $0x90] sm:$0xff]
    %v123 = vld [vmem:[#allocation8 + $0x98] sm:$0xff]
    %v124 = vld [vmem:[#allocation8 + $0xa0] sm:$0xff]
    %v125 = vld [vmem:[#allocation8 + $0xa8] sm:$0xff]
    %v126 = vld [vmem:[#allocation8 + $0xb0] sm:$0xff]
    %v127 = vld [vmem:[#allocation8 + $0xb8] sm:$0xff]
    %v128 = vld [vmem:[#allocation8 + $0xc0] sm:$0xff]
    %v129 = vld [vmem:[#allocation8 + $0xc8] sm:$0xff]
    %v130 = vld [vmem:[#allocation8 + $0xd0] sm:$0xff]
    %v131 = vld [vmem:[#allocation8 + $0xd8] sm:$0xff]
    %v132 = vld [vmem:[#allocation8 + $0xe0] sm:$0xff]
    %v133 = vld [vmem:[#allocation8 + $0xe8] sm:$0xff]
    %v134 = vld [vmem:[#allocation8 + $0xf0] sm:$0xff]
    %v135 = vld [vmem:[#allocation8 + $0xf8] sm:$0xff]
    %v136 = vld [vmem:[#allocation8 + $0x100] sm:$0xff]
    %v137 = vld [vmem:[#allocation8 + $0x108] sm:$0xff]
    %v138 = vld [vmem:[#allocation8 + $0x110] sm:$0xff]
    %v139 = vld [vmem:[#allocation8 + $0x118] sm:$0xff]
    %v140 = vld [vmem:[#allocation8 + $0x120] sm:$0xff]
    %v141 = vld [vmem:[#allocation8 + $0x128] sm:$0xff]
    %v142 = vld [vmem:[#allocation8 + $0x130] sm:$0xff]
    %v143 = vld [vmem:[#allocation8 + $0x138] sm:$0xff]
    %v144 = vld [vmem:[#allocation8 + $0x140] sm:$0xff]
    %v145 = vld [vmem:[#allocation8 + $0x148] sm:$0xff]
    %v146 = vld [vmem:[#allocation8 + $0x150] sm:$0xff]
    %v147 = vld [vmem:[#allocation8 + $0x158] sm:$0xff]
    %v148 = vld [vmem:[#allocation8 + $0x160] sm:$0xff]
    %v149 = vld [vmem:[#allocation8 + $0x168] sm:$0xff]
    %v150 = vld [vmem:[#allocation8 + $0x170] sm:$0xff]
    %v151 = vld [vmem:[#allocation8 + $0x178] sm:$0xff]
    %v152 = vld [vmem:[#allocation8 + $0x180] sm:$0xff]
    %v153 = vld [vmem:[#allocation8 + $0x188] sm:$0xff]
    %v154 = vld [vmem:[#allocation8 + $0x190] sm:$0xff]
    %v155 = vld [vmem:[#allocation8 + $0x198] sm:$0xff]
    %v156 = vld [vmem:[#allocation8 + $0x1a0] sm:$0xff]
    %v157 = vld [vmem:[#allocation8 + $0x1a8] sm:$0xff]
    %v158 = vld [vmem:[#allocation8 + $0x1b0] sm:$0xff]
    %v159 = vld [vmem:[#allocation8 + $0x1b8] sm:$0xff]
    %v160 = vld [vmem:[#allocation8 + $0x1c0] sm:$0xff]
    %v161 = vld [vmem:[#allocation8 + $0x1c8] sm:$0xff]
    %v162 = vld [vmem:[#allocation8 + $0x1d0] sm:$0xff]
    %v163 = vld [vmem:[#allocation8 + $0x1d8] sm:$0xff]
    %v164 = vld [vmem:[#allocation8 + $0x1e0] sm:$0xff]
    %v165 = vld [vmem:[#allocation8 + $0x1e8] sm:$0xff]
    %v166 = vld [vmem:[#allocation8 + $0x1f0] sm:$0xff]
    %v167 = vld [vmem:[#allocation8 + $0x1f8] sm:$0xff]
    %v168 = vld [vmem:[#allocation8 + $0x200] sm:$0xff]
    %v169 = vld [vmem:[#allocation8 + $0x208] sm:$0xff]
    %v170 = vld [vmem:[#allocation8 + $0x210] sm:$0xff]
    %v171 = vld [vmem:[#allocation8 + $0x218] sm:$0xff]
    %v172 = vld [vmem:[#allocation8 + $0x220] sm:$0xff]
    %v173 = vld [vmem:[#allocation8 + $0x228] sm:$0xff]
    %v174 = vld [vmem:[#allocation8 + $0x230] sm:$0xff]
    %v175 = vld [vmem:[#allocation8 + $0x238] sm:$0xff]
    %v176 = vld [vmem:[#allocation8 + $0x240] sm:$0xff]
    %v177 = vld [vmem:[#allocation8 + $0x248] sm:$0xff]
    %v178 = vld [vmem:[#allocation8 + $0x250] sm:$0xff]
    %v179 = vld [vmem:[#allocation8 + $0x258] sm:$0xff]
    %v180 = vld [vmem:[#allocation8 + $0x260] sm:$0xff]
    %v181 = vld [vmem:[#allocation8 + $0x268] sm:$0xff]
    %v182 = vld [vmem:[#allocation8 + $0x270] sm:$0xff]
    %v183 = vld [vmem:[#allocation8 + $0x278] sm:$0xff]
    %v184 = vld [vmem:[#allocation8 + $0x280] sm:$0xff]
    %v185 = vld [vmem:[#allocation8 + $0x288] sm:$0xff]
    %v186 = vld [vmem:[#allocation8 + $0x290] sm:$0xff]
    %v187 = vld [vmem:[#allocation8 + $0x298] sm:$0xff]
    %v188 = vld [vmem:[#allocation8 + $0x2a0] sm:$0xff]
    %v189 = vld [vmem:[#allocation8 + $0x2a8] sm:$0xff]
    %v190 = vld [vmem:[#allocation8 + $0x2b0] sm:$0xff]
    %v191 = vld [vmem:[#allocation8 + $0x2b8] sm:$0xff]
    %v192 = vld [vmem:[#allocation8 + $0x2c0] sm:$0xff]
    %v193 = vld [vmem:[#allocation8 + $0x2c8] sm:$0xff]
    %v194 = vld [vmem:[#allocation8 + $0x2d0] sm:$0xff]
    %v195 = vld [vmem:[#allocation8 + $0x2d8] sm:$0xff]
    %v196 = vld [vmem:[#allocation8 + $0x2e0] sm:$0xff]
    %v197 = vld [vmem:[#allocation8 + $0x2e8] sm:$0xff]
    %v198 = vld [vmem:[#allocation8 + $0x2f0] sm:$0xff]
    %v199 = vld [vmem:[#allocation8 + $0x2f8] sm:$0xff]
    %v200 = vld [vmem:[%s4] sm:$0x3f]
    %v202 = vlaneseq
    %v203 = vshrl.u32 %v202, 7
    %v204 = vsub.s32 0, %v203
    %v205 = vrot.slane %v200, %v204
    %v206 = vlaneseq
    %v207 = vshrl.u32 %v206, 7
    %v208 = vsub.s32 1, %v207
    %v209 = vrot.slane %v200, %v208
    %v210 = vlaneseq
    %v211 = vshrl.u32 %v210, 7
    %v212 = vsub.s32 2, %v211
    %v213 = vrot.slane %v200, %v212
    %v214 = vlaneseq
    %v215 = vshrl.u32 %v214, 7
    %v216 = vsub.s32 3, %v215
    %v217 = vrot.slane %v200, %v216
    %v218 = vlaneseq
    %v219 = vshrl.u32 %v218, 7
    %v220 = vsub.s32 4, %v219
    %v221 = vrot.slane %v200, %v220
    %v222 = vlaneseq
    %v223 = vshrl.u32 %v222, 7
    %v224 = vsub.s32 5, %v223
    %v225 = vrot.slane %v200, %v224
    %232 = vmatprep.subr.mxu0 %v105
    %233 = vmatpush1.msra.mxu0 %v104
    %234 = vmatprep.subr.mxu0 %v111
    %235 = vmatpush1.msra.mxu0 %v110
    %236 = vmatprep.subr.mxu0 %v117
    %237 = vmatpush1.msra.mxu0 %v116
    %238 = vmatprep.subr.mxu0 %v123
    %239 = vmatpush1.msra.mxu0 %v122
    %240 = vmatprep.subr.mxu0 %v129
    %241 = vmatpush1.msra.mxu0 %v128
    %242 = vmatprep.subr.mxu0 %v135
    %243 = vmatpush1.msra.mxu0 %v134
    %244 = vmatprep.subr.mxu0 %v141
    %245 = vmatpush1.msra.mxu0 %v140
    %246 = vmatprep.subr.mxu0 %v147
    %247 = vmatpush1.msra.mxu0 %v146
    %248 = vmatprep.subr.mxu0 %v153
    %249 = vmatpush1.msra.mxu0 %v152
    %250 = vmatprep.subr.mxu0 %v159
    %251 = vmatpush1.msra.mxu0 %v158
    %252 = vmatprep.subr.mxu0 %v165
    %253 = vmatpush1.msra.mxu0 %v164
    %254 = vmatprep.subr.mxu0 %v171
    %255 = vmatpush1.msra.mxu0 %v170
    %256 = vmatprep.subr.mxu0 %v177
    %257 = vmatpush1.msra.mxu0 %v176
    %258 = vmatprep.subr.mxu0 %v183
    %259 = vmatpush1.msra.mxu0 %v182
    %260 = vmatprep.subr.mxu0 %v189
    %261 = vmatpush1.msra.mxu0 %v188
    %262 = vmatprep.subr.mxu0 %v195
    %263 = vmatpush1.msra.mxu0 %v194
    %264 = vmatprep.subr.mxu0 0.0
    %265 = vmatpush1.msra.mxu0 0.0
    %266 = vmatprep.subr.mxu0 0.0
    %267 = vmatpush1.msra.mxu0 0.0
    %268 = vmatprep.subr.mxu0 0.0
    %269 = vmatpush1.msra.mxu0 0.0
    %270 = vmatprep.subr.mxu0 0.0
    %271 = vmatpush1.msra.mxu0 0.0
    %272 = vmatprep.subr.mxu0 0.0
    %273 = vmatpush1.msra.mxu0 0.0
    %274 = vmatprep.subr.mxu0 0.0
    %275 = vmatpush1.msra.mxu0 0.0
    %276 = vmatprep.subr.mxu0 0.0
    %277 = vmatpush1.msra.mxu0 0.0
    %278 = vmatprep.subr.mxu0 0.0
    %279 = vmatpush1.msra.mxu0 0.0
    %280 = vmatprep.subr.mxu0 0.0
    %281 = vmatpush1.msra.mxu0 0.0
    %282 = vmatprep.subr.mxu0 0.0
    %283 = vmatpush1.msra.mxu0 0.0
    %284 = vmatprep.subr.mxu0 0.0
    %285 = vmatpush1.msra.mxu0 0.0
    %286 = vmatprep.subr.mxu0 0.0
    %287 = vmatpush1.msra.mxu0 0.0
    %288 = vmatprep.subr.mxu0 0.0
    %289 = vmatpush1.msra.mxu0 0.0
    %290 = vmatprep.subr.mxu0 0.0
    %291 = vmatpush1.msra.mxu0 0.0
    %292 = vmatprep.subr.mxu0 0.0
    %293 = vmatpush1.msra.mxu0 0.0
    %294 = vmatprep.subr.mxu0 0.0
    %295 = vmatpush1.msra.mxu0 0.0
    %296 = vmatprep.mubr.f32.mxu0 0.0
    %297 = vmatmul.mubr.f32.gmra.mrb[0].mxu0 %v103
    %v298 = vpop.f32.mrb[0].mxu0
    %v299 = vadd.f32 %v205, %v298
    %v300 = vpop.f32.mrb[0].mxu0
    %v301 = vadd.f32 %v209, %v300
    %302 = vdwg.mxu0
    %303 = vmatprep.subr.mxu0 %v107
    %304 = vmatpush1.msra.mxu0 %v106
    %305 = vmatprep.subr.mxu0 %v113
    %306 = vmatpush1.msra.mxu0 %v112
    %307 = vmatprep.subr.mxu0 %v119
    %308 = vmatpush1.msra.mxu0 %v118
    %309 = vmatprep.subr.mxu0 %v125
    %310 = vmatpush1.msra.mxu0 %v124
    %311 = vmatprep.subr.mxu0 %v131
    %312 = vmatpush1.msra.mxu0 %v130
    %313 = vmatprep.subr.mxu0 %v137
    %314 = vmatpush1.msra.mxu0 %v136
    %315 = vmatprep.subr.mxu0 %v143
    %316 = vmatpush1.msra.mxu0 %v142
    %317 = vmatprep.subr.mxu0 %v149
    %318 = vmatpush1.msra.mxu0 %v148
    %319 = vmatprep.subr.mxu0 %v155
    %320 = vmatpush1.msra.mxu0 %v154
    %321 = vmatprep.subr.mxu0 %v161
    %322 = vmatpush1.msra.mxu0 %v160
    %323 = vmatprep.subr.mxu0 %v167
    %324 = vmatpush1.msra.mxu0 %v166
    %325 = vmatprep.subr.mxu0 %v173
    %326 = vmatpush1.msra.mxu0 %v172
    %327 = vmatprep.subr.mxu0 %v179
    %328 = vmatpush1.msra.mxu0 %v178
    %329 = vmatprep.subr.mxu0 %v185
    %330 = vmatpush1.msra.mxu0 %v184
    %331 = vmatprep.subr.mxu0 %v191
    %332 = vmatpush1.msra.mxu0 %v190
    %333 = vmatprep.subr.mxu0 %v197
    %334 = vmatpush1.msra.mxu0 %v196
    %335 = vmatprep.subr.mxu0 0.0
    %336 = vmatpush1.msra.mxu0 0.0
    %337 = vmatprep.subr.mxu0 0.0
    %338 = vmatpush1.msra.mxu0 0.0
    %339 = vmatprep.subr.mxu0 0.0
    %340 = vmatpush1.msra.mxu0 0.0
    %341 = vmatprep.subr.mxu0 0.0
    %342 = vmatpush1.msra.mxu0 0.0
    %343 = vmatprep.subr.mxu0 0.0
    %344 = vmatpush1.msra.mxu0 0.0
    %345 = vmatprep.subr.mxu0 0.0
    %346 = vmatpush1.msra.mxu0 0.0
    %347 = vmatprep.subr.mxu0 0.0
    %348 = vmatpush1.msra.mxu0 0.0
    %349 = vmatprep.subr.mxu0 0.0
    %350 = vmatpush1.msra.mxu0 0.0
    %351 = vmatprep.subr.mxu0 0.0
    %352 = vmatpush1.msra.mxu0 0.0
    %353 = vmatprep.subr.mxu0 0.0
    %354 = vmatpush1.msra.mxu0 0.0
    %355 = vmatprep.subr.mxu0 0.0
    %356 = vmatpush1.msra.mxu0 0.0
    %357 = vmatprep.subr.mxu0 0.0
    %358 = vmatpush1.msra.mxu0 0.0
    %359 = vmatprep.subr.mxu0 0.0
    %360 = vmatpush1.msra.mxu0 0.0
    %361 = vmatprep.subr.mxu0 0.0
    %362 = vmatpush1.msra.mxu0 0.0
    %363 = vmatprep.subr.mxu0 0.0
    %364 = vmatpush1.msra.mxu0 0.0
    %365 = vmatprep.subr.mxu0 0.0
    %366 = vmatpush1.msra.mxu0 0.0
    %367 = vmatprep.mubr.f32.mxu0 0.0
    %368 = vmatmul.mubr.f32.gmra.mrb[0].mxu0 %v103
    %v369 = vpop.f32.mrb[0].mxu0
    %v370 = vadd.f32 %v213, %v369
    %v371 = vpop.f32.mrb[0].mxu0
    %v372 = vadd.f32 %v217, %v371
    %373 = vdwg.mxu0
    %374 = vmatprep.subr.mxu0 %v109
    %375 = vmatpush1.msra.mxu0 %v108
    %376 = vmatprep.subr.mxu0 %v115
    %377 = vmatpush1.msra.mxu0 %v114
    %378 = vmatprep.subr.mxu0 %v121
    %379 = vmatpush1.msra.mxu0 %v120
    %380 = vmatprep.subr.mxu0 %v127
    %381 = vmatpush1.msra.mxu0 %v126
    %382 = vmatprep.subr.mxu0 %v133
    %383 = vmatpush1.msra.mxu0 %v132
    %384 = vmatprep.subr.mxu0 %v139
    %385 = vmatpush1.msra.mxu0 %v138
    %386 = vmatprep.subr.mxu0 %v145
    %387 = vmatpush1.msra.mxu0 %v144
    %388 = vmatprep.subr.mxu0 %v151
    %389 = vmatpush1.msra.mxu0 %v150
    %390 = vmatprep.subr.mxu0 %v157
    %391 = vmatpush1.msra.mxu0 %v156
    %392 = vmatprep.subr.mxu0 %v163
    %393 = vmatpush1.msra.mxu0 %v162
    %394 = vmatprep.subr.mxu0 %v169
    %395 = vmatpush1.msra.mxu0 %v168
    %396 = vmatprep.subr.mxu0 %v175
    %397 = vmatpush1.msra.mxu0 %v174
    %398 = vmatprep.subr.mxu0 %v181
    %399 = vmatpush1.msra.mxu0 %v180
    %400 = vmatprep.subr.mxu0 %v187
    %401 = vmatpush1.msra.mxu0 %v186
    %402 = vmatprep.subr.mxu0 %v193
    %403 = vmatpush1.msra.mxu0 %v192
    %404 = vmatprep.subr.mxu0 %v199
    %405 = vmatpush1.msra.mxu0 %v198
    %406 = vmatprep.subr.mxu0 0.0
    %407 = vmatpush1.msra.mxu0 0.0
    %408 = vmatprep.subr.mxu0 0.0
    %409 = vmatpush1.msra.mxu0 0.0
    %410 = vmatprep.subr.mxu0 0.0
    %411 = vmatpush1.msra.mxu0 0.0
    %412 = vmatprep.subr.mxu0 0.0
    %413 = vmatpush1.msra.mxu0 0.0
    %414 = vmatprep.subr.mxu0 0.0
    %415 = vmatpush1.msra.mxu0 0.0
    %416 = vmatprep.subr.mxu0 0.0
    %417 = vmatpush1.msra.mxu0 0.0
    %418 = vmatprep.subr.mxu0 0.0
    %419 = vmatpush1.msra.mxu0 0.0
    %420 = vmatprep.subr.mxu0 0.0
    %421 = vmatpush1.msra.mxu0 0.0
    %422 = vmatprep.subr.mxu0 0.0
    %423 = vmatpush1.msra.mxu0 0.0
    %424 = vmatprep.subr.mxu0 0.0
    %425 = vmatpush1.msra.mxu0 0.0
    %426 = vmatprep.subr.mxu0 0.0
    %427 = vmatpush1.msra.mxu0 0.0
    %428 = vmatprep.subr.mxu0 0.0
    %429 = vmatpush1.msra.mxu0 0.0
    %430 = vmatprep.subr.mxu0 0.0
    %431 = vmatpush1.msra.mxu0 0.0
    %432 = vmatprep.subr.mxu0 0.0
    %433 = vmatpush1.msra.mxu0 0.0
    %434 = vmatprep.subr.mxu0 0.0
    %435 = vmatpush1.msra.mxu0 0.0
    %436 = vmatprep.subr.mxu0 0.0
    %437 = vmatpush1.msra.mxu0 0.0
    %438 = vmatprep.mubr.f32.mxu0 0.0
    %439 = vmatmul.mubr.f32.gmra.mrb[0].mxu0 %v103
    %v440 = vpop.f32.mrb[0].mxu0
    %v441 = vadd.f32 %v221, %v440
    %v442 = vpop.f32.mrb[0].mxu0
    %v443 = vadd.f32 %v225, %v442
    %444 = vdwg.mxu0
    %v445 = vmul.f32 %v299, 0.5
    %v446 = vmul.f32 %v301, 0.5
    %v447 = vmul.f32 %v370, 0.5
    %v448 = vmul.f32 %v372, 0.5
    %v449 = vmul.f32 %v441, 0.5
    %v450 = vmul.f32 %v443, 0.5
    %v451 = vtanh.pop %v445
    %v452 = vtanh.pop %v446
    %v453 = vtanh.pop %v447
    %v454 = vtanh.pop %v448
    %v455 = vtanh.pop %v449
    %v456 = vtanh.pop %v450
    %v457 = vadd.f32 %v451, 1.0
    %v458 = vadd.f32 %v452, 1.0
    %v459 = vadd.f32 %v453, 1.0
    %v460 = vadd.f32 %v454, 1.0
    %v461 = vadd.f32 %v455, 1.0
    %v462 = vadd.f32 %v456, 1.0
    %v463 = vmul.f32 %v457, 0.5
    %v464 = vmul.f32 %v458, 0.5
    %v465 = vmul.f32 %v459, 0.5
    %v466 = vmul.f32 %v460, 0.5
    %v467 = vmul.f32 %v461, 0.5
    %v468 = vmul.f32 %v462, 0.5
    %469 = vst [vmem:[#allocation2] sm:$0xff] %v463
    %470 = vst [vmem:[#allocation2 + $0x8] sm:$0xff] %v464
    %471 = vst [vmem:[#allocation2 + $0x10] sm:$0xff] %v465
    %472 = vst [vmem:[#allocation2 + $0x18] sm:$0xff] %v466
    %473 = vst [vmem:[#allocation2 + $0x20] sm:$0xff] %v467
    %474 = vst [vmem:[#allocation2 + $0x28] sm:$0xff] %v468
    %v475 = vld [vmem:[#allocation6] sm:$0xff]
    %v476 = vld [vmem:[#allocation6 + $0x8] sm:$0xff]
    %v477 = vld [vmem:[#allocation6 + $0x10] sm:$0xff]
    %v478 = vld [vmem:[#allocation6 + $0x18] sm:$0xff]
    %v479 = vld [vmem:[#allocation6 + $0x20] sm:$0xff]
    %v480 = vld [vmem:[#allocation6 + $0x28] sm:$0xff]
    %v481 = vld [vmem:[#allocation6 + $0x30] sm:$0xff]
    %v482 = vld [vmem:[#allocation6 + $0x38] sm:$0xff]
    %v483 = vld [vmem:[#allocation6 + $0x40] sm:$0xff]
    %v484 = vld [vmem:[#allocation6 + $0x48] sm:$0xff]
    %v485 = vld [vmem:[#allocation6 + $0x50] sm:$0xff]
    %v486 = vld [vmem:[#allocation6 + $0x58] sm:$0xff]
    %v487 = vld [vmem:[#allocation6 + $0x60] sm:$0xff]
    %v488 = vld [vmem:[#allocation6 + $0x68] sm:$0xff]
    %v489 = vld [vmem:[#allocation6 + $0x70] sm:$0xff]
    %v490 = vld [vmem:[#allocation6 + $0x78] sm:$0xff]
    %v491 = vld [vmem:[%s2] sm:$0x1]
    %v493 = vlaneseq
    %v494 = vshrl.u32 %v493, 7
    %v495 = vsub.s32 0, %v494
    %v496 = vrot.slane %v491, %v495
    %498 = vmatprep.subr.mxu0 0.0
    %499 = vmatpush1.msra.mxu0 %v475
    %500 = vmatprep.subr.mxu0 0.0
    %501 = vmatpush1.msra.mxu0 %v476
    %502 = vmatprep.subr.mxu0 0.0
    %503 = vmatpush1.msra.mxu0 %v477
    %504 = vmatprep.subr.mxu0 0.0
    %505 = vmatpush1.msra.mxu0 %v478
    %506 = vmatprep.subr.mxu0 0.0
    %507 = vmatpush1.msra.mxu0 %v479
    %508 = vmatprep.subr.mxu0 0.0
    %509 = vmatpush1.msra.mxu0 %v480
    %510 = vmatprep.subr.mxu0 0.0
    %511 = vmatpush1.msra.mxu0 %v481
    %512 = vmatprep.subr.mxu0 0.0
    %513 = vmatpush1.msra.mxu0 %v482
    %514 = vmatprep.subr.mxu0 0.0
    %515 = vmatpush1.msra.mxu0 %v483
    %516 = vmatprep.subr.mxu0 0.0
    %517 = vmatpush1.msra.mxu0 %v484
    %518 = vmatprep.subr.mxu0 0.0
    %519 = vmatpush1.msra.mxu0 %v485
    %520 = vmatprep.subr.mxu0 0.0
    %521 = vmatpush1.msra.mxu0 %v486
    %522 = vmatprep.subr.mxu0 0.0
    %523 = vmatpush1.msra.mxu0 %v487
    %524 = vmatprep.subr.mxu0 0.0
    %525 = vmatpush1.msra.mxu0 %v488
    %526 = vmatprep.subr.mxu0 0.0
    %527 = vmatpush1.msra.mxu0 %v489
    %528 = vmatprep.subr.mxu0 0.0
    %529 = vmatpush1.msra.mxu0 %v490
    %530 = vmatprep.subr.mxu0 0.0
    %531 = vmatpush1.msra.mxu0 0.0
    %532 = vmatprep.subr.mxu0 0.0
    %533 = vmatpush1.msra.mxu0 0.0
    %534 = vmatprep.subr.mxu0 0.0
    %535 = vmatpush1.msra.mxu0 0.0
    %536 = vmatprep.subr.mxu0 0.0
    %537 = vmatpush1.msra.mxu0 0.0
    %538 = vmatprep.subr.mxu0 0.0
    %539 = vmatpush1.msra.mxu0 0.0
    %540 = vmatprep.subr.mxu0 0.0
    %541 = vmatpush1.msra.mxu0 0.0
    %542 = vmatprep.subr.mxu0 0.0
    %543 = vmatpush1.msra.mxu0 0.0
    %544 = vmatprep.subr.mxu0 0.0
    %545 = vmatpush1.msra.mxu0 0.0
    %546 = vmatprep.subr.mxu0 0.0
    %547 = vmatpush1.msra.mxu0 0.0
    %548 = vmatprep.subr.mxu0 0.0
    %549 = vmatpush1.msra.mxu0 0.0
    %550 = vmatprep.subr.mxu0 0.0
    %551 = vmatpush1.msra.mxu0 0.0
    %552 = vmatprep.subr.mxu0 0.0
    %553 = vmatpush1.msra.mxu0 0.0
    %554 = vmatprep.subr.mxu0 0.0
    %555 = vmatpush1.msra.mxu0 0.0
    %556 = vmatprep.subr.mxu0 0.0
    %557 = vmatpush1.msra.mxu0 0.0
    %558 = vmatprep.subr.mxu0 0.0
    %559 = vmatpush1.msra.mxu0 0.0
    %560 = vmatprep.subr.mxu0 0.0
    %561 = vmatpush1.msra.mxu0 0.0
    %562 = vmatprep.mubr.f32.mxu0 0.0
    %563 = vmatmul.mubr.f32.gmra.mrb[0].mxu0 %v103
    %v564 = vpop.f32.mrb[0].mxu0
    %v565 = vadd.f32 %v496, %v564
    %v566 = vpop.f32.mrb[0].mxu0
    %567 = vdwg.mxu0
    %v568 = vmul.f32 %v565, 0.5
    %v569 = vtanh.pop %v568
    %v570 = vadd.f32 %v569, 1.0
    %v571 = vmul.f32 %v570, 0.5
    %572 = vst [vmem:[#allocation12] sm:$0xff] %v571
    %v573 = vld [vmem:[#allocation9] sm:$0xff]
    %v574 = vld [vmem:[#allocation9 + $0x8] sm:$0xff]
    %v575 = vld [vmem:[#allocation9 + $0x10] sm:$0xff]
    %v576 = vld [vmem:[#allocation9 + $0x18] sm:$0xff]
    %v577 = vld [vmem:[#allocation9 + $0x20] sm:$0xff]
    %v578 = vld [vmem:[#allocation9 + $0x28] sm:$0xff]
    %v579 = vld [vmem:[#allocation9 + $0x30] sm:$0xff]
    %v580 = vld [vmem:[#allocation9 + $0x38] sm:$0xff]
    %v581 = vld [vmem:[#allocation9 + $0x40] sm:$0xff]
    %v582 = vld [vmem:[#allocation9 + $0x48] sm:$0xff]
    %v583 = vld [vmem:[#allocation9 + $0x50] sm:$0xff]
    %v584 = vld [vmem:[#allocation9 + $0x58] sm:$0xff]
    %v585 = vld [vmem:[#allocation9 + $0x60] sm:$0xff]
    %v586 = vld [vmem:[#allocation9 + $0x68] sm:$0xff]
    %v587 = vld [vmem:[#allocation9 + $0x70] sm:$0xff]
    %v588 = vld [vmem:[#allocation9 + $0x78] sm:$0xff]
    %v589 = vld [vmem:[#allocation9 + $0x80] sm:$0xff]
    %v590 = vld [vmem:[#allocation9 + $0x88] sm:$0xff]
    %v591 = vld [vmem:[#allocation9 + $0x90] sm:$0xff]
    %v592 = vld [vmem:[#allocation9 + $0x98] sm:$0xff]
    %v593 = vld [vmem:[#allocation9 + $0xa0] sm:$0xff]
    %v594 = vld [vmem:[#allocation9 + $0xa8] sm:$0xff]
    %v595 = vld [vmem:[#allocation9 + $0xb0] sm:$0xff]
    %v596 = vld [vmem:[#allocation9 + $0xb8] sm:$0xff]
    %v597 = vld [vmem:[#allocation9 + $0xc0] sm:$0xff]
    %v598 = vld [vmem:[#allocation9 + $0xc8] sm:$0xff]
    %v599 = vld [vmem:[#allocation9 + $0xd0] sm:$0xff]
    %v600 = vld [vmem:[#allocation9 + $0xd8] sm:$0xff]
    %v601 = vld [vmem:[#allocation9 + $0xe0] sm:$0xff]
    %v602 = vld [vmem:[#allocation9 + $0xe8] sm:$0xff]
    %v603 = vld [vmem:[#allocation9 + $0xf0] sm:$0xff]
    %v604 = vld [vmem:[#allocation9 + $0xf8] sm:$0xff]
    %v605 = vld [vmem:[%s6] sm:$0x3]
    %v607 = vlaneseq
    %v608 = vshrl.u32 %v607, 7
    %v609 = vsub.s32 0, %v608
    %v610 = vrot.slane %v605, %v609
    %v611 = vlaneseq
    %v612 = vshrl.u32 %v611, 7
    %v613 = vsub.s32 1, %v612
    %v614 = vrot.slane %v605, %v613
    %617 = vmatprep.subr.mxu0 %v574
    %618 = vmatpush1.msra.mxu0 %v573
    %619 = vmatprep.subr.mxu0 %v576
    %620 = vmatpush1.msra.mxu0 %v575
    %621 = vmatprep.subr.mxu0 %v578
    %622 = vmatpush1.msra.mxu0 %v577
    %623 = vmatprep.subr.mxu0 %v580
    %624 = vmatpush1.msra.mxu0 %v579
    %625 = vmatprep.subr.mxu0 %v582
    %626 = vmatpush1.msra.mxu0 %v581
    %627 = vmatprep.subr.mxu0 %v584
    %628 = vmatpush1.msra.mxu0 %v583
    %629 = vmatprep.subr.mxu0 %v586
    %630 = vmatpush1.msra.mxu0 %v585
    %631 = vmatprep.subr.mxu0 %v588
    %632 = vmatpush1.msra.mxu0 %v587
    %633 = vmatprep.subr.mxu0 %v590
    %634 = vmatpush1.msra.mxu0 %v589
    %635 = vmatprep.subr.mxu0 %v592
    %636 = vmatpush1.msra.mxu0 %v591
    %637 = vmatprep.subr.mxu0 %v594
    %638 = vmatpush1.msra.mxu0 %v593
    %639 = vmatprep.subr.mxu0 %v596
    %640 = vmatpush1.msra.mxu0 %v595
    %641 = vmatprep.subr.mxu0 %v598
    %642 = vmatpush1.msra.mxu0 %v597
    %643 = vmatprep.subr.mxu0 %v600
    %644 = vmatpush1.msra.mxu0 %v599
    %645 = vmatprep.subr.mxu0 %v602
    %646 = vmatpush1.msra.mxu0 %v601
    %647 = vmatprep.subr.mxu0 %v604
    %648 = vmatpush1.msra.mxu0 %v603
    %649 = vmatprep.subr.mxu0 0.0
    %650 = vmatpush1.msra.mxu0 0.0
    %651 = vmatprep.subr.mxu0 0.0
    %652 = vmatpush1.msra.mxu0 0.0
    %653 = vmatprep.subr.mxu0 0.0
    %654 = vmatpush1.msra.mxu0 0.0
    %655 = vmatprep.subr.mxu0 0.0
    %656 = vmatpush1.msra.mxu0 0.0
    %657 = vmatprep.subr.mxu0 0.0
    %658 = vmatpush1.msra.mxu0 0.0
    %659 = vmatprep.subr.mxu0 0.0
    %660 = vmatpush1.msra.mxu0 0.0
    %661 = vmatprep.subr.mxu0 0.0
    %662 = vmatpush1.msra.mxu0 0.0
    %663 = vmatprep.subr.mxu0 0.0
    %664 = vmatpush1.msra.mxu0 0.0
    %665 = vmatprep.subr.mxu0 0.0
    %666 = vmatpush1.msra.mxu0 0.0
    %667 = vmatprep.subr.mxu0 0.0
    %668 = vmatpush1.msra.mxu0 0.0
    %669 = vmatprep.subr.mxu0 0.0
    %670 = vmatpush1.msra.mxu0 0.0
    %671 = vmatprep.subr.mxu0 0.0
    %672 = vmatpush1.msra.mxu0 0.0
    %673 = vmatprep.subr.mxu0 0.0
    %674 = vmatpush1.msra.mxu0 0.0
    %675 = vmatprep.subr.mxu0 0.0
    %676 = vmatpush1.msra.mxu0 0.0
    %677 = vmatprep.subr.mxu0 0.0
    %678 = vmatpush1.msra.mxu0 0.0
    %679 = vmatprep.subr.mxu0 0.0
    %680 = vmatpush1.msra.mxu0 0.0
    %681 = vmatprep.mubr.f32.mxu0 0.0
    %682 = vmatmul.mubr.f32.gmra.mrb[0].mxu0 %v571
    %v683 = vpop.f32.mrb[0].mxu0
    %v684 = vadd.f32 %v610, %v683
    %v685 = vpop.f32.mrb[0].mxu0
    %v686 = vadd.f32 %v614, %v685
    %687 = vdwg.mxu0
    %v688 = vmul.f32 %v684, 0.5
    %v689 = vmul.f32 %v686, 0.5
    %v690 = vtanh.pop %v688
    %v691 = vtanh.pop %v689
    %v692 = vadd.f32 %v690, 1.0
    %v693 = vadd.f32 %v691, 1.0
    %v694 = vmul.f32 %v692, 0.5
    %v695 = vmul.f32 %v693, 0.5
    %v696 = vld [vmem:[#allocation2] sm:$0xff]
    %v697 = vld [vmem:[#allocation2 + $0x8] sm:$0xff]
    %v698 = vmul.f32 %v696, %v694
    %v699 = vmul.f32 %v697, %v695
    %700 = vst [vmem:[#allocation13] sm:$0xff] %v698
    %701 = vst [vmem:[#allocation13 + $0x8] sm:$0xff] %v699
    %v702 = vld [vmem:[#allocation11] sm:$0xff]
    %v703 = vld [vmem:[#allocation11 + $0x8] sm:$0xff]
    %v704 = vld [vmem:[#allocation11 + $0x10] sm:$0xff]
    %v705 = vld [vmem:[#allocation11 + $0x18] sm:$0xff]
    %v706 = vld [vmem:[#allocation11 + $0x20] sm:$0xff]
    %v707 = vld [vmem:[#allocation11 + $0x28] sm:$0xff]
    %v708 = vld [vmem:[#allocation11 + $0x30] sm:$0xff]
    %v709 = vld [vmem:[#allocation11 + $0x38] sm:$0xff]
    %v710 = vld [vmem:[#allocation11 + $0x40] sm:$0xff]
    %v711 = vld [vmem:[#allocation11 + $0x48] sm:$0xff]
    %v712 = vld [vmem:[#allocation11 + $0x50] sm:$0xff]
    %v713 = vld [vmem:[#allocation11 + $0x58] sm:$0xff]
    %v714 = vld [vmem:[#allocation11 + $0x60] sm:$0xff]
    %v715 = vld [vmem:[#allocation11 + $0x68] sm:$0xff]
    %v716 = vld [vmem:[#allocation11 + $0x70] sm:$0xff]
    %v717 = vld [vmem:[#allocation11 + $0x78] sm:$0xff]
    %v718 = vld [vmem:[#allocation11 + $0x80] sm:$0xff]
    %v719 = vld [vmem:[#allocation11 + $0x88] sm:$0xff]
    %v720 = vld [vmem:[#allocation11 + $0x90] sm:$0xff]
    %v721 = vld [vmem:[#allocation11 + $0x98] sm:$0xff]
    %v722 = vld [vmem:[#allocation11 + $0xa0] sm:$0xff]
    %v723 = vld [vmem:[#allocation11 + $0xa8] sm:$0xff]
    %v724 = vld [vmem:[#allocation11 + $0xb0] sm:$0xff]
    %v725 = vld [vmem:[#allocation11 + $0xb8] sm:$0xff]
    %v726 = vld [vmem:[#allocation11 + $0xc0] sm:$0xff]
    %v727 = vld [vmem:[#allocation11 + $0xc8] sm:$0xff]
    %v728 = vld [vmem:[#allocation11 + $0xd0] sm:$0xff]
    %v729 = vld [vmem:[#allocation11 + $0xd8] sm:$0xff]
    %v730 = vld [vmem:[#allocation11 + $0xe0] sm:$0xff]
    %v731 = vld [vmem:[#allocation11 + $0xe8] sm:$0xff]
    %v732 = vld [vmem:[#allocation11 + $0xf0] sm:$0xff]
    %v733 = vld [vmem:[#allocation11 + $0xf8] sm:$0xff]
    %v734 = vld [vmem:[#allocation11 + $0x100] sm:$0xff]
    %v735 = vld [vmem:[#allocation11 + $0x108] sm:$0xff]
    %v736 = vld [vmem:[#allocation11 + $0x110] sm:$0xff]
    %v737 = vld [vmem:[#allocation11 + $0x118] sm:$0xff]
    %v738 = vld [vmem:[#allocation11 + $0x120] sm:$0xff]
    %v739 = vld [vmem:[#allocation11 + $0x128] sm:$0xff]
    %v740 = vld [vmem:[#allocation11 + $0x130] sm:$0xff]
    %v741 = vld [vmem:[#allocation11 + $0x138] sm:$0xff]
    %v742 = vld [vmem:[#allocation11 + $0x140] sm:$0xff]
    %v743 = vld [vmem:[#allocation11 + $0x148] sm:$0xff]
    %v744 = vld [vmem:[#allocation11 + $0x150] sm:$0xff]
    %v745 = vld [vmem:[#allocation11 + $0x158] sm:$0xff]
    %v746 = vld [vmem:[#allocation11 + $0x160] sm:$0xff]
    %v747 = vld [vmem:[#allocation11 + $0x168] sm:$0xff]
    %v748 = vld [vmem:[#allocation11 + $0x170] sm:$0xff]
    %v749 = vld [vmem:[#allocation11 + $0x178] sm:$0xff]
    %v750 = vld [vmem:[#allocation11 + $0x180] sm:$0xff]
    %v751 = vld [vmem:[#allocation11 + $0x188] sm:$0xff]
    %v752 = vld [vmem:[#allocation11 + $0x190] sm:$0xff]
    %v753 = vld [vmem:[#allocation11 + $0x198] sm:$0xff]
    %v754 = vld [vmem:[#allocation11 + $0x1a0] sm:$0xff]
    %v755 = vld [vmem:[#allocation11 + $0x1a8] sm:$0xff]
    %v756 = vld [vmem:[#allocation11 + $0x1b0] sm:$0xff]
    %v757 = vld [vmem:[#allocation11 + $0x1b8] sm:$0xff]
    %v758 = vld [vmem:[#allocation11 + $0x1c0] sm:$0xff]
    %v759 = vld [vmem:[#allocation11 + $0x1c8] sm:$0xff]
    %v760 = vld [vmem:[#allocation11 + $0x1d0] sm:$0xff]
    %v761 = vld [vmem:[#allocation11 + $0x1d8] sm:$0xff]
    %v762 = vld [vmem:[#allocation11 + $0x1e0] sm:$0xff]
    %v763 = vld [vmem:[#allocation11 + $0x1e8] sm:$0xff]
    %v764 = vld [vmem:[#allocation11 + $0x1f0] sm:$0xff]
    %v765 = vld [vmem:[#allocation11 + $0x1f8] sm:$0xff]
    %v766 = vld [vmem:[#allocation11 + $0x200] sm:$0xff]
    %v767 = vld [vmem:[#allocation11 + $0x208] sm:$0xff]
    %v768 = vld [vmem:[#allocation11 + $0x210] sm:$0xff]
    %v769 = vld [vmem:[#allocation11 + $0x218] sm:$0xff]
    %v770 = vld [vmem:[#allocation11 + $0x220] sm:$0xff]
    %v771 = vld [vmem:[#allocation11 + $0x228] sm:$0xff]
    %v772 = vld [vmem:[#allocation11 + $0x230] sm:$0xff]
    %v773 = vld [vmem:[#allocation11 + $0x238] sm:$0xff]
    %v774 = vld [vmem:[#allocation11 + $0x240] sm:$0xff]
    %v775 = vld [vmem:[#allocation11 + $0x248] sm:$0xff]
    %v776 = vld [vmem:[#allocation11 + $0x250] sm:$0xff]
    %v777 = vld [vmem:[#allocation11 + $0x258] sm:$0xff]
    %v778 = vld [vmem:[#allocation11 + $0x260] sm:$0xff]
    %v779 = vld [vmem:[#allocation11 + $0x268] sm:$0xff]
    %v780 = vld [vmem:[#allocation11 + $0x270] sm:$0xff]
    %v781 = vld [vmem:[#allocation11 + $0x278] sm:$0xff]
    %v782 = vld [vmem:[#allocation11 + $0x280] sm:$0xff]
    %v783 = vld [vmem:[#allocation11 + $0x288] sm:$0xff]
    %v784 = vld [vmem:[#allocation11 + $0x290] sm:$0xff]
    %v785 = vld [vmem:[#allocation11 + $0x298] sm:$0xff]
    %v786 = vld [vmem:[#allocation11 + $0x2a0] sm:$0xff]
    %v787 = vld [vmem:[#allocation11 + $0x2a8] sm:$0xff]
    %v788 = vld [vmem:[#allocation11 + $0x2b0] sm:$0xff]
    %v789 = vld [vmem:[#allocation11 + $0x2b8] sm:$0xff]
    %v790 = vld [vmem:[#allocation11 + $0x2c0] sm:$0xff]
    %v791 = vld [vmem:[#allocation11 + $0x2c8] sm:$0xff]
    %v792 = vld [vmem:[#allocation11 + $0x2d0] sm:$0xff]
    %v793 = vld [vmem:[#allocation11 + $0x2d8] sm:$0xff]
    %v794 = vld [vmem:[#allocation11 + $0x2e0] sm:$0xff]
    %v795 = vld [vmem:[#allocation11 + $0x2e8] sm:$0xff]
    %v796 = vld [vmem:[#allocation11 + $0x2f0] sm:$0xff]
    %v797 = vld [vmem:[#allocation11 + $0x2f8] sm:$0xff]
    %v798 = vld [vmem:[#allocation11 + $0x300] sm:$0xff]
    %v799 = vld [vmem:[#allocation11 + $0x308] sm:$0xff]
    %v800 = vld [vmem:[#allocation11 + $0x310] sm:$0xff]
    %v801 = vld [vmem:[#allocation11 + $0x318] sm:$0xff]
    %v802 = vld [vmem:[#allocation11 + $0x320] sm:$0xff]
    %v803 = vld [vmem:[#allocation11 + $0x328] sm:$0xff]
    %v804 = vld [vmem:[#allocation11 + $0x330] sm:$0xff]
    %v805 = vld [vmem:[#allocation11 + $0x338] sm:$0xff]
    %v806 = vld [vmem:[#allocation11 + $0x340] sm:$0xff]
    %v807 = vld [vmem:[#allocation11 + $0x348] sm:$0xff]
    %v808 = vld [vmem:[#allocation11 + $0x350] sm:$0xff]
    %v809 = vld [vmem:[#allocation11 + $0x358] sm:$0xff]
    %v810 = vld [vmem:[#allocation11 + $0x360] sm:$0xff]
    %v811 = vld [vmem:[#allocation11 + $0x368] sm:$0xff]
    %v812 = vld [vmem:[#allocation11 + $0x370] sm:$0xff]
    %v813 = vld [vmem:[#allocation11 + $0x378] sm:$0xff]
    %v814 = vld [vmem:[#allocation11 + $0x380] sm:$0xff]
    %v815 = vld [vmem:[#allocation11 + $0x388] sm:$0xff]
    %v816 = vld [vmem:[#allocation11 + $0x390] sm:$0xff]
    %v817 = vld [vmem:[#allocation11 + $0x398] sm:$0xff]
    %v818 = vld [vmem:[#allocation11 + $0x3a0] sm:$0xff]
    %v819 = vld [vmem:[#allocation11 + $0x3a8] sm:$0xff]
    %v820 = vld [vmem:[#allocation11 + $0x3b0] sm:$0xff]
    %v821 = vld [vmem:[#allocation11 + $0x3b8] sm:$0xff]
    %v822 = vld [vmem:[#allocation11 + $0x3c0] sm:$0xff]
    %v823 = vld [vmem:[#allocation11 + $0x3c8] sm:$0xff]
    %v824 = vld [vmem:[#allocation11 + $0x3d0] sm:$0xff]
    %v825 = vld [vmem:[#allocation11 + $0x3d8] sm:$0xff]
    %v826 = vld [vmem:[#allocation11 + $0x3e0] sm:$0xff]
    %v827 = vld [vmem:[#allocation11 + $0x3e8] sm:$0xff]
    %v828 = vld [vmem:[#allocation11 + $0x3f0] sm:$0xff]
    %v829 = vld [vmem:[#allocation11 + $0x3f8] sm:$0xff]
    %v830 = vld [vmem:[%s8] sm:$0xf]
    %v832 = vlaneseq
    %v833 = vshrl.u32 %v832, 7
    %v834 = vsub.s32 0, %v833
    %v835 = vrot.slane %v830, %v834
    %v836 = vlaneseq
    %v837 = vshrl.u32 %v836, 7
    %v838 = vsub.s32 1, %v837
    %v839 = vrot.slane %v830, %v838
    %v840 = vlaneseq
    %v841 = vshrl.u32 %v840, 7
    %v842 = vsub.s32 2, %v841
    %v843 = vrot.slane %v830, %v842
    %v844 = vlaneseq
    %v845 = vshrl.u32 %v844, 7
    %v846 = vsub.s32 3, %v845
    %v847 = vrot.slane %v830, %v846
    %852 = vmatprep.subr.mxu0 %v703
    %853 = vmatpush1.msra.mxu0 %v702
    %854 = vmatprep.subr.mxu0 %v707
    %855 = vmatpush1.msra.mxu0 %v706
    %856 = vmatprep.subr.mxu0 %v711
    %857 = vmatpush1.msra.mxu0 %v710
    %858 = vmatprep.subr.mxu0 %v715
    %859 = vmatpush1.msra.mxu0 %v714
    %860 = vmatprep.subr.mxu0 %v719
    %861 = vmatpush1.msra.mxu0 %v718
    %862 = vmatprep.subr.mxu0 %v723
    %863 = vmatpush1.msra.mxu0 %v722
    %864 = vmatprep.subr.mxu0 %v727
    %865 = vmatpush1.msra.mxu0 %v726
    %866 = vmatprep.subr.mxu0 %v731
    %867 = vmatpush1.msra.mxu0 %v730
    %868 = vmatprep.subr.mxu0 %v735
    %869 = vmatpush1.msra.mxu0 %v734
    %870 = vmatprep.subr.mxu0 %v739
    %871 = vmatpush1.msra.mxu0 %v738
    %872 = vmatprep.subr.mxu0 %v743
    %873 = vmatpush1.msra.mxu0 %v742
    %874 = vmatprep.subr.mxu0 %v747
    %875 = vmatpush1.msra.mxu0 %v746
    %876 = vmatprep.subr.mxu0 %v751
    %877 = vmatpush1.msra.mxu0 %v750
    %878 = vmatprep.subr.mxu0 %v755
    %879 = vmatpush1.msra.mxu0 %v754
    %880 = vmatprep.subr.mxu0 %v759
    %881 = vmatpush1.msra.mxu0 %v758
    %882 = vmatprep.subr.mxu0 %v763
    %883 = vmatpush1.msra.mxu0 %v762
    %884 = vmatprep.subr.mxu0 %v767
    %885 = vmatpush1.msra.mxu0 %v766
    %886 = vmatprep.subr.mxu0 %v771
    %887 = vmatpush1.msra.mxu0 %v770
    %888 = vmatprep.subr.mxu0 %v775
    %889 = vmatpush1.msra.mxu0 %v774
    %890 = vmatprep.subr.mxu0 %v779
    %891 = vmatpush1.msra.mxu0 %v778
    %892 = vmatprep.subr.mxu0 %v783
    %893 = vmatpush1.msra.mxu0 %v782
    %894 = vmatprep.subr.mxu0 %v787
    %895 = vmatpush1.msra.mxu0 %v786
    %896 = vmatprep.subr.mxu0 %v791
    %897 = vmatpush1.msra.mxu0 %v790
    %898 = vmatprep.subr.mxu0 %v795
    %899 = vmatpush1.msra.mxu0 %v794
    %900 = vmatprep.subr.mxu0 %v799
    %901 = vmatpush1.msra.mxu0 %v798
    %902 = vmatprep.subr.mxu0 %v803
    %903 = vmatpush1.msra.mxu0 %v802
    %904 = vmatprep.subr.mxu0 %v807
    %905 = vmatpush1.msra.mxu0 %v806
    %906 = vmatprep.subr.mxu0 %v811
    %907 = vmatpush1.msra.mxu0 %v810
    %908 = vmatprep.subr.mxu0 %v815
    %909 = vmatpush1.msra.mxu0 %v814
    %910 = vmatprep.subr.mxu0 %v819
    %911 = vmatpush1.msra.mxu0 %v818
    %912 = vmatprep.subr.mxu0 %v823
    %913 = vmatpush1.msra.mxu0 %v822
    %914 = vmatprep.subr.mxu0 %v827
    %915 = vmatpush1.msra.mxu0 %v826
    %916 = vmatprep.mubr.f32.mxu0 %v699
    %917 = vmatmul.mubr.f32.gmra.mrb[0].mxu0 %v698
    %v918 = vpop.f32.mrb[0].mxu0
    %v919 = vadd.f32 %v835, %v918
    %v920 = vpop.f32.mrb[0].mxu0
    %v921 = vadd.f32 %v839, %v920
    %922 = vdwg.mxu0
    %923 = vmatprep.subr.mxu0 %v705
    %924 = vmatpush1.msra.mxu0 %v704
    %925 = vmatprep.subr.mxu0 %v709
    %926 = vmatpush1.msra.mxu0 %v708
    %927 = vmatprep.subr.mxu0 %v713
    %928 = vmatpush1.msra.mxu0 %v712
    %929 = vmatprep.subr.mxu0 %v717
    %930 = vmatpush1.msra.mxu0 %v716
    %931 = vmatprep.subr.mxu0 %v721
    %932 = vmatpush1.msra.mxu0 %v720
    %933 = vmatprep.subr.mxu0 %v725
    %934 = vmatpush1.msra.mxu0 %v724
    %935 = vmatprep.subr.mxu0 %v729
    %936 = vmatpush1.msra.mxu0 %v728
    %937 = vmatprep.subr.mxu0 %v733
    %938 = vmatpush1.msra.mxu0 %v732
    %939 = vmatprep.subr.mxu0 %v737
    %940 = vmatpush1.msra.mxu0 %v736
    %941 = vmatprep.subr.mxu0 %v741
    %942 = vmatpush1.msra.mxu0 %v740
    %943 = vmatprep.subr.mxu0 %v745
    %944 = vmatpush1.msra.mxu0 %v744
    %945 = vmatprep.subr.mxu0 %v749
    %946 = vmatpush1.msra.mxu0 %v748
    %947 = vmatprep.subr.mxu0 %v753
    %948 = vmatpush1.msra.mxu0 %v752
    %949 = vmatprep.subr.mxu0 %v757
    %950 = vmatpush1.msra.mxu0 %v756
    %951 = vmatprep.subr.mxu0 %v761
    %952 = vmatpush1.msra.mxu0 %v760
    %953 = vmatprep.subr.mxu0 %v765
    %954 = vmatpush1.msra.mxu0 %v764
    %955 = vmatprep.subr.mxu0 %v769
    %956 = vmatpush1.msra.mxu0 %v768
    %957 = vmatprep.subr.mxu0 %v773
    %958 = vmatpush1.msra.mxu0 %v772
    %959 = vmatprep.subr.mxu0 %v777
    %960 = vmatpush1.msra.mxu0 %v776
    %961 = vmatprep.subr.mxu0 %v781
    %962 = vmatpush1.msra.mxu0 %v780
    %963 = vmatprep.subr.mxu0 %v785
    %964 = vmatpush1.msra.mxu0 %v784
    %965 = vmatprep.subr.mxu0 %v789
    %966 = vmatpush1.msra.mxu0 %v788
    %967 = vmatprep.subr.mxu0 %v793
    %968 = vmatpush1.msra.mxu0 %v792
    %969 = vmatprep.subr.mxu0 %v797
    %970 = vmatpush1.msra.mxu0 %v796
    %971 = vmatprep.subr.mxu0 %v801
    %972 = vmatpush1.msra.mxu0 %v800
    %973 = vmatprep.subr.mxu0 %v805
    %974 = vmatpush1.msra.mxu0 %v804
    %975 = vmatprep.subr.mxu0 %v809
    %976 = vmatpush1.msra.mxu0 %v808
    %977 = vmatprep.subr.mxu0 %v813
    %978 = vmatpush1.msra.mxu0 %v812
    %979 = vmatprep.subr.mxu0 %v817
    %980 = vmatpush1.msra.mxu0 %v816
    %981 = vmatprep.subr.mxu0 %v821
    %982 = vmatpush1.msra.mxu0 %v820
    %983 = vmatprep.subr.mxu0 %v825
    %984 = vmatpush1.msra.mxu0 %v824
    %985 = vmatprep.subr.mxu0 %v829
    %986 = vmatpush1.msra.mxu0 %v828
    %987 = vmatprep.mubr.f32.mxu0 %v699
    %988 = vmatmul.mubr.f32.gmra.mrb[0].mxu0 %v698
    %v989 = vpop.f32.mrb[0].mxu0
    %v990 = vadd.f32 %v843, %v989
    %v991 = vpop.f32.mrb[0].mxu0
    %v992 = vadd.f32 %v847, %v991
    %993 = vdwg.mxu0
    %v994 = vmul.f32 %v919, 0.5
    %v995 = vmul.f32 %v921, 0.5
    %v996 = vmul.f32 %v990, 0.5
    %v997 = vmul.f32 %v992, 0.5
    %v998 = vtanh.pop %v994
    %v999 = vtanh.pop %v995
    %v1000 = vtanh.pop %v996
    %v1001 = vtanh.pop %v997
    %v1002 = vadd.f32 %v998, 1.0
    %v1003 = vadd.f32 %v999, 1.0
    %v1004 = vadd.f32 %v1000, 1.0
    %v1005 = vadd.f32 %v1001, 1.0
    %v1006 = vmul.f32 %v1002, 0.5
    %v1007 = vmul.f32 %v1003, 0.5
    %v1008 = vmul.f32 %v1004, 0.5
    %v1009 = vmul.f32 %v1005, 0.5
    %v1010 = vld [vmem:[#allocation2 + $0x10] sm:$0xff]
    %v1011 = vld [vmem:[#allocation2 + $0x18] sm:$0xff]
    %v1012 = vld [vmem:[#allocation2 + $0x20] sm:$0xff]
    %v1013 = vld [vmem:[#allocation2 + $0x28] sm:$0xff]
    %v1014 = vmul.f32 %v1010, %v1006
    %v1015 = vmul.f32 %v1011, %v1007
    %v1016 = vmul.f32 %v1012, %v1008
    %v1017 = vmul.f32 %v1013, %v1009
    %1018 = vst [vmem:[#allocation15] sm:$0xff] %v1014
    %1019 = vst [vmem:[#allocation15 + $0x8] sm:$0xff] %v1015
    %1020 = vst [vmem:[#allocation15 + $0x10] sm:$0xff] %v1016
    %1021 = vst [vmem:[#allocation15 + $0x18] sm:$0xff] %v1017
    // Predicated region
    $region58: #{tpu_custom_call.1} parent=1 // pred_check
      _
    $region59: #{tpu_custom_call.1} parent=1 // pred_check_branch
      %1023 = sbr.rel (0) target = $region61
    $region60: #{tpu_custom_call.1} parent=1 // pred_region
      %s1025 = ssub.s32 128, 128
      %1026 = vsyncadd [#allocation5], %s1025
      %s1028 = sshll.u32 [#allocation12], 4
      %s1029 = int_to_ptr.vmem [resolvable:$true] %s1028
      %1031 = dma.vmem_to_hbm [thread:$0]  %s1029, 128, %s9, [#allocation5]
    $region61: #{tpu_custom_call.1} parent=1 // pred_fallthru
      _
    // Predicated region
    $region62: #{tpu_custom_call.1} parent=1 // pred_check
      _
    $region63: #{tpu_custom_call.1} parent=1 // pred_check_branch
      %1033 = sbr.rel (0) target = $region65
    $region64: #{tpu_custom_call.1} parent=1 // pred_region
      %s1035 = ssub.s32 256, 256
      %1036 = vsyncadd [#allocation14], %s1035
      %s1038 = sshll.u32 [#allocation13], 4
      %s1039 = int_to_ptr.vmem [resolvable:$true] %s1038
      %1041 = dma.vmem_to_hbm [thread:$0]  %s1039, 256, %s10, [#allocation14]
    $region65: #{tpu_custom_call.1} parent=1 // pred_fallthru
      _
    // Predicated region
    $region66: #{tpu_custom_call.1} parent=1 // pred_check
      _
    $region67: #{tpu_custom_call.1} parent=1 // pred_check_branch
      %1043 = sbr.rel (0) target = $region69
    $region68: #{tpu_custom_call.1} parent=1 // pred_region
      %s1045 = ssub.s32 512, 512
      %1046 = vsyncadd [#allocation14], %s1045
      %s1048 = sshll.u32 [#allocation15], 4
      %s1049 = int_to_ptr.vmem [resolvable:$true] %s1048
      %1051 = dma.vmem_to_hbm [thread:$0]  %s1049, 512, %s11, [#allocation14]
    $region69: #{tpu_custom_call.1} parent=1 // pred_fallthru
      _
    // Predicated region
    $region70: #{tpu_custom_call.1} parent=1 // pred_check
      _
    $region71: #{tpu_custom_call.1} parent=1 // pred_check_branch
      %1053 = sbr.rel (0) target = $region73
    $region72: #{tpu_custom_call.1} parent=1 // pred_region
      %1054 = dma.done [#allocation5], 128
    $region73: #{tpu_custom_call.1} parent=1 // pred_fallthru
      _
    // Predicated region
    $region74: #{tpu_custom_call.1} parent=1 // pred_check
      _
    $region75: #{tpu_custom_call.1} parent=1 // pred_check_branch
      %1056 = sbr.rel (0) target = $region77
    $region76: #{tpu_custom_call.1} parent=1 // pred_region
      %1057 = dma.done [#allocation14], 256
    $region77: #{tpu_custom_call.1} parent=1 // pred_fallthru
      _
    // Predicated region
    $region78: #{tpu_custom_call.1} parent=1 // pred_check
      _
    $region79: #{tpu_custom_call.1} parent=1 // pred_check_branch
      %1059 = sbr.rel (0) target = $region81
    $region80: #{tpu_custom_call.1} parent=1 // pred_region
      %1060 = dma.done [#allocation14], 512
    $region81: #{tpu_custom_call.1} parent=1 // pred_fallthru
      _
    %1061 = vsyncpa [#allocation4], 1
    %1062 = vsyncpa [#allocation7], 1
    %1063 = vsyncpa [#allocation10], 1
    %1064 = vsyncpa [#allocation5], 1
    %1065 = vsyncpa [#allocation14], 1

</llo_original>
